<compile_context>
chip_gen: v7x
topology: tpu7x:2x2x1
jax: 0.10.0
libtpu: 0.0.40
codegen_flags: <defaults>
</compile_context>

<pallas_src>
import jax
import jax.numpy as jnp
from jax import lax
from jax.experimental import pallas as pl
from jax.experimental.pallas import tpu as pltpu

HIDDEN_PAD = 128   # lane-dense hidden width (real hidden zero-padded up)
OUT_PAD = 128      # lane-dense output width (real out_dim zero-padded up)
VOCAB_PAD = 32     # 26-letter vocab padded to a sublane-friendly 32


def _round_up(x, m):
    return ((x + m - 1) // m) * m


def _hybrid_kernel(xc_ref, xs_ref,
                   weff_ref, bm1_ref, wm2_ref, bm2_ref,
                   ws1_ref, bs1_ref, ws2_ref, bs2_ref,
                   wfm_ref, wfs_ref, bf_ref,
                   o_ref):
    tm = xc_ref.shape[0]
    seq_len = xc_ref.shape[1]
    vocab_pad = weff_ref.shape[1]
    hidden_pad = weff_ref.shape[2]

    xc = xc_ref[...]                                            # (TM, seq_len) int32
    vocab_iota = lax.broadcasted_iota(jnp.int32, (tm, vocab_pad), 1)

    # --- ModularBranch fc1 with the embedding folded in ---------------------
    # emb(x).view(B,-1) @ W1  ==  sum_p one_hot(x[:,p]) @ (emb @ W1[p])
    acc = jnp.zeros((tm, hidden_pad), jnp.float32)
    for p in range(seq_len):                                    # static, small
        oh = (xc[:, p:p + 1] == vocab_iota).astype(jnp.float32) # (TM, VOCAB_PAD)
        acc = acc + jnp.dot(oh, weff_ref[p],
                            preferred_element_type=jnp.float32)
    m = jnp.maximum(acc + bm1_ref[...], 0.0)

    # --- ModularBranch fc2 ---------------------------------------------------
    m = jnp.maximum(jnp.dot(m, wm2_ref[...],
                            preferred_element_type=jnp.float32) + bm2_ref[...],
                    0.0)

    # --- StatisticalBranch ---------------------------------------------------
    s = jnp.maximum(jnp.dot(xs_ref[...], ws1_ref[...],
                            preferred_element_type=jnp.float32) + bs1_ref[...],
                    0.0)
    s = jnp.maximum(jnp.dot(s, ws2_ref[...],
                            preferred_element_type=jnp.float32) + bs2_ref[...],
                    0.0)

    # --- fc_final on concat([m, s]) expressed as split matmuls --------------
    o_ref[...] = (jnp.dot(m, wfm_ref[...], preferred_element_type=jnp.float32)
                  + jnp.dot(s, wfs_ref[...], preferred_element_type=jnp.float32)
                  + bf_ref[...])


def prepare_params(p):
    """One-time param prep: fold embedding into fc1, split wf, pad lane-dense."""
    emb = p["emb"]                                   # (26, 16)
    vocab, edim = emb.shape
    seq16, hidden = p["wm1"].shape
    seq_len = seq16 // edim
    out_dim = p["wf"].shape[1]

    def pad_cols(w, n):
        return jnp.pad(w, ((0, 0), (0, n - w.shape[1])))

    def pad_rows(w, n):
        return jnp.pad(w, ((0, n - w.shape[0]), (0, 0)))

    # W_eff[p, v, h] = sum_c emb[v, c] * wm1[p*16 + c, h]
    wm1 = p["wm1"].reshape(seq_len, edim, hidden)
    weff = jnp.einsum("vc,pch->pvh", emb, wm1)       # (seq_len, 26, hidden)
    weff = jnp.pad(weff, ((0, 0),
                          (0, VOCAB_PAD - vocab),
                          (0, HIDDEN_PAD - hidden)))

    return dict(
        weff=weff,
        bm1=pad_cols(p["bm1"], HIDDEN_PAD),
        wm2=pad_cols(pad_rows(p["wm2"], HIDDEN_PAD), HIDDEN_PAD),
        bm2=pad_cols(p["bm2"], HIDDEN_PAD),
        ws1=pad_cols(p["ws1"], HIDDEN_PAD),
        bs1=pad_cols(p["bs1"], HIDDEN_PAD),
        ws2=pad_cols(pad_rows(p["ws2"], HIDDEN_PAD), HIDDEN_PAD),
        bs2=pad_cols(p["bs2"], HIDDEN_PAD),
        wfm=pad_cols(pad_rows(p["wf"][:hidden], HIDDEN_PAD), OUT_PAD),
        wfs=pad_cols(pad_rows(p["wf"][hidden:], HIDDEN_PAD), OUT_PAD),
        bf=pad_cols(p["bf"], OUT_PAD),
        out_dim=out_dim,
    )


def hybrid_affine_net(x_cipher, x_stat, prepped, *, tile_m=512):
    """Forward pass matching HybridAffineNet(seq_len, stat_dim, hidden_dim, out_dim)."""
    B, seq_len = x_cipher.shape
    stat_dim = x_stat.shape[1]
    out_dim = prepped["out_dim"]

    # Batch tiling: TM rows per grid step (sweepable).  Pad B to a multiple.
    tm = min(tile_m, _round_up(B, 8))
    b_pad = _round_up(B, tm)
    if b_pad != B:
        x_cipher = jnp.pad(x_cipher, ((0, b_pad - B), (0, 0)))
        x_stat = jnp.pad(x_stat, ((0, b_pad - B), (0, 0)))

    xc = x_cipher.astype(jnp.int32)
    xs = x_stat.astype(jnp.float32)

    weights = (prepped["weff"], prepped["bm1"], prepped["wm2"], prepped["bm2"],
               prepped["ws1"], prepped["bs1"], prepped["ws2"], prepped["bs2"],
               prepped["wfm"], prepped["wfs"], prepped["bf"])

    def _resident(shape):
        nd = len(shape)
        return pl.BlockSpec(shape, lambda i, _nd=nd: (0,) * _nd)

    out = pl.pallas_call(
        _hybrid_kernel,
        out_shape=jax.ShapeDtypeStruct((b_pad, OUT_PAD), jnp.float32),
        grid=(b_pad // tm,),
        in_specs=[pl.BlockSpec((tm, seq_len), lambda i: (i, 0)),
                  pl.BlockSpec((tm, stat_dim), lambda i: (i, 0))]
                 + [_resident(w.shape) for w in weights],
        out_specs=pl.BlockSpec((tm, OUT_PAD), lambda i: (i, 0)),
        compiler_params=pltpu.CompilerParams(
            dimension_semantics=("parallel",)),   # batch axis: megacore-shardable
    )(xc, xs, *weights)

    return out[:B, :out_dim]


def init_params(key, seq_len, stat_dim, hidden_dim, out_dim=2):
    """Deterministic parameter init (shapes mirror the PyTorch module)."""
    ks = jax.random.split(key, 12)

    def lin(kw, kb, fan_in, fan_out):
        bound = 1.0 / jnp.sqrt(fan_in)
        w = jax.random.uniform(kw, (fan_in, fan_out), jnp.float32, -bound, bound)
        b = jax.random.uniform(kb, (1, fan_out), jnp.float32, -bound, bound)
        return w, b

    emb = jax.random.normal(ks[0], (26, 16), jnp.float32)        # nn.Embedding(26, 16)
    wm1, bm1 = lin(ks[1], ks[2], seq_len * 16, hidden_dim)       # modular.fc1
    wm2, bm2 = lin(ks[3], ks[4], hidden_dim, hidden_dim)         # modular.fc2
    ws1, bs1 = lin(ks[5], ks[6], stat_dim, hidden_dim)           # stat.fc1
    ws2, bs2 = lin(ks[7], ks[8], hidden_dim, hidden_dim)         # stat.fc2
    wf, bf = lin(ks[9], ks[10], 2 * hidden_dim, out_dim)         # fc_final
    return dict(emb=emb, wm1=wm1, bm1=bm1, wm2=wm2, bm2=bm2,
                ws1=ws1, bs1=bs1, ws2=ws2, bs2=bs2, wf=wf, bf=bf)


def reference_forward(x_cipher, x_stat, p):
    """Pure-JAX reference mirroring the PyTorch forward."""
    B = x_cipher.shape[0]
    xm = jnp.take(p["emb"], x_cipher, axis=0).reshape(B, -1)
    m = jnp.maximum(xm @ p["wm1"] + p["bm1"], 0.0)
    m = jnp.maximum(m @ p["wm2"] + p["bm2"], 0.0)
    s = jnp.maximum(x_stat @ p["ws1"] + p["bs1"], 0.0)
    s = jnp.maximum(s @ p["ws2"] + p["bs2"], 0.0)
    x = jnp.concatenate([m, s], axis=1)
    return x @ p["wf"] + p["bf"]


if __name__ == "__main__":
    B, SEQ_LEN, STAT_DIM, HIDDEN, OUT_DIM = 2, 8, 6, 32, 2

    key = jax.random.PRNGKey(0)
    k_params, k_cipher, k_stat = jax.random.split(key, 3)

    raw_params = init_params(k_params, SEQ_LEN, STAT_DIM, HIDDEN, OUT_DIM)
    prepped = prepare_params(raw_params)        # one-time: fold emb, pad, split wf

    x_cipher = jax.random.randint(k_cipher, (B, SEQ_LEN), 0, 26, dtype=jnp.int32)
    x_stat = jax.random.normal(k_stat, (B, STAT_DIM), jnp.float32)

    out = hybrid_affine_net(x_cipher, x_stat, prepped)
    out = jax.block_until_ready(out)

    ref = reference_forward(x_cipher, x_stat, raw_params)
    assert out.shape == (B, OUT_DIM)
    assert jnp.allclose(out, ref, atol=1e-4, rtol=1e-4)

    print("KERNEL_OK")
</pallas_src>

<mosaic_0001>
module attributes {stable_mosaic.version = 11 : i64} {
  func.func @_hybrid_kernel(%arg0: i32, %arg1: memref<8x8xi32, #tpu.memory_space<vmem>>, %arg2: memref<8x6xf32, #tpu.memory_space<vmem>>, %arg3: memref<8x32x128xf32, #tpu.memory_space<vmem>>, %arg4: memref<1x128xf32, #tpu.memory_space<vmem>>, %arg5: memref<128x128xf32, #tpu.memory_space<vmem>>, %arg6: memref<1x128xf32, #tpu.memory_space<vmem>>, %arg7: memref<6x128xf32, #tpu.memory_space<vmem>>, %arg8: memref<1x128xf32, #tpu.memory_space<vmem>>, %arg9: memref<128x128xf32, #tpu.memory_space<vmem>>, %arg10: memref<1x128xf32, #tpu.memory_space<vmem>>, %arg11: memref<128x128xf32, #tpu.memory_space<vmem>>, %arg12: memref<128x128xf32, #tpu.memory_space<vmem>>, %arg13: memref<1x128xf32, #tpu.memory_space<vmem>>, %arg14: memref<8x128xf32, #tpu.memory_space<vmem>>) attributes {dimension_semantics = [#tpu.dimension_semantics<parallel>], iteration_bounds = array<i64: 1>, scalar_prefetch = 0 : i64, scratch_operands = 0 : i64, tpu.core_type = #tpu.core_type<tc>, window_params = [{transform_indices = @transform_0, window_bounds = array<i64: 8, 8>}, {transform_indices = @transform_1, window_bounds = array<i64: 8, 6>}, {pipeline_mode = #tpu.pipeline_mode<synchronous>, transform_indices = @transform_2, window_bounds = array<i64: 8, 32, 128>}, {pipeline_mode = #tpu.pipeline_mode<synchronous>, transform_indices = @transform_3, window_bounds = array<i64: 1, 128>}, {pipeline_mode = #tpu.pipeline_mode<synchronous>, transform_indices = @transform_4, window_bounds = array<i64: 128, 128>}, {pipeline_mode = #tpu.pipeline_mode<synchronous>, transform_indices = @transform_5, window_bounds = array<i64: 1, 128>}, {pipeline_mode = #tpu.pipeline_mode<synchronous>, transform_indices = @transform_6, window_bounds = array<i64: 6, 128>}, {pipeline_mode = #tpu.pipeline_mode<synchronous>, transform_indices = @transform_7, window_bounds = array<i64: 1, 128>}, {pipeline_mode = #tpu.pipeline_mode<synchronous>, transform_indices = @transform_8, window_bounds = array<i64: 128, 128>}, {pipeline_mode = #tpu.pipeline_mode<synchronous>, transform_indices = @transform_9, window_bounds = array<i64: 1, 128>}, {pipeline_mode = #tpu.pipeline_mode<synchronous>, transform_indices = @transform_10, window_bounds = array<i64: 128, 128>}, {pipeline_mode = #tpu.pipeline_mode<synchronous>, transform_indices = @transform_11, window_bounds = array<i64: 128, 128>}, {pipeline_mode = #tpu.pipeline_mode<synchronous>, transform_indices = @transform_12, window_bounds = array<i64: 1, 128>}, {transform_indices = @transform_13, window_bounds = array<i64: 8, 128>}]} {
    %c0 = arith.constant 0 : index
    %c0_0 = arith.constant 0 : index
    %0 = vector.load %arg1[%c0, %c0_0] : memref<8x8xi32, #tpu.memory_space<vmem>>, vector<8x8xi32>
    %1 = tpu.iota {dimensions = array<i32: 1>} : vector<8x32xi32>
    %cst = arith.constant 0.000000e+00 : f32
    %2 = vector.broadcast %cst : f32 to vector<8x128xf32>
    %3 = vector.extract_strided_slice %0 {offsets = [0, 0], sizes = [8, 1], strides = [1, 1]} : vector<8x8xi32> to vector<8x1xi32>
    %4 = vector.broadcast %3 : vector<8x1xi32> to vector<8x32xi32>
    %5 = arith.cmpi eq, %4, %1 : vector<8x32xi32>
    %6 = arith.extui %5 : vector<8x32xi1> to vector<8x32xi32>
    %7 = arith.sitofp %6 : vector<8x32xi32> to vector<8x32xf32>
    %c0_1 = arith.constant 0 : index
    %c0_2 = arith.constant 0 : index
    %c0_3 = arith.constant 0 : index
    %8 = vector.load %arg3[%c0_1, %c0_2, %c0_3] : memref<8x32x128xf32, #tpu.memory_space<vmem>>, vector<1x32x128xf32>
    %9 = vector.shape_cast %8 : vector<1x32x128xf32> to vector<32x128xf32>
    %cst_4 = arith.constant dense<0.000000e+00> : vector<8x128xf32>
    %10 = tpu.matmul %7, %9, %cst_4 {dimension_numbers = #tpu.dot_dimension_numbers<[1], [0], [0], [1], [0, 0, 1, 1], [], []>} : vector<8x32xf32>, vector<32x128xf32>, vector<8x128xf32> -> vector<8x128xf32>
    %11 = arith.addf %2, %10 : vector<8x128xf32>
    %12 = vector.extract_strided_slice %0 {offsets = [0, 1], sizes = [8, 1], strides = [1, 1]} : vector<8x8xi32> to vector<8x1xi32>
    %13 = vector.broadcast %12 : vector<8x1xi32> to vector<8x32xi32>
    %14 = arith.cmpi eq, %13, %1 : vector<8x32xi32>
    %15 = arith.extui %14 : vector<8x32xi1> to vector<8x32xi32>
    %16 = arith.sitofp %15 : vector<8x32xi32> to vector<8x32xf32>
    %c1 = arith.constant 1 : index
    %c0_5 = arith.constant 0 : index
    %c0_6 = arith.constant 0 : index
    %17 = vector.load %arg3[%c1, %c0_5, %c0_6] : memref<8x32x128xf32, #tpu.memory_space<vmem>>, vector<1x32x128xf32>
    %18 = vector.shape_cast %17 : vector<1x32x128xf32> to vector<32x128xf32>
    %cst_7 = arith.constant dense<0.000000e+00> : vector<8x128xf32>
    %19 = tpu.matmul %16, %18, %cst_7 {dimension_numbers = #tpu.dot_dimension_numbers<[1], [0], [0], [1], [0, 0, 1, 1], [], []>} : vector<8x32xf32>, vector<32x128xf32>, vector<8x128xf32> -> vector<8x128xf32>
    %20 = arith.addf %11, %19 : vector<8x128xf32>
    %21 = vector.extract_strided_slice %0 {offsets = [0, 2], sizes = [8, 1], strides = [1, 1]} : vector<8x8xi32> to vector<8x1xi32>
    %22 = vector.broadcast %21 : vector<8x1xi32> to vector<8x32xi32>
    %23 = arith.cmpi eq, %22, %1 : vector<8x32xi32>
    %24 = arith.extui %23 : vector<8x32xi1> to vector<8x32xi32>
    %25 = arith.sitofp %24 : vector<8x32xi32> to vector<8x32xf32>
    %c2 = arith.constant 2 : index
    %c0_8 = arith.constant 0 : index
    %c0_9 = arith.constant 0 : index
    %26 = vector.load %arg3[%c2, %c0_8, %c0_9] : memref<8x32x128xf32, #tpu.memory_space<vmem>>, vector<1x32x128xf32>
    %27 = vector.shape_cast %26 : vector<1x32x128xf32> to vector<32x128xf32>
    %cst_10 = arith.constant dense<0.000000e+00> : vector<8x128xf32>
    %28 = tpu.matmul %25, %27, %cst_10 {dimension_numbers = #tpu.dot_dimension_numbers<[1], [0], [0], [1], [0, 0, 1, 1], [], []>} : vector<8x32xf32>, vector<32x128xf32>, vector<8x128xf32> -> vector<8x128xf32>
    %29 = arith.addf %20, %28 : vector<8x128xf32>
    %30 = vector.extract_strided_slice %0 {offsets = [0, 3], sizes = [8, 1], strides = [1, 1]} : vector<8x8xi32> to vector<8x1xi32>
    %31 = vector.broadcast %30 : vector<8x1xi32> to vector<8x32xi32>
    %32 = arith.cmpi eq, %31, %1 : vector<8x32xi32>
    %33 = arith.extui %32 : vector<8x32xi1> to vector<8x32xi32>
    %34 = arith.sitofp %33 : vector<8x32xi32> to vector<8x32xf32>
    %c3 = arith.constant 3 : index
    %c0_11 = arith.constant 0 : index
    %c0_12 = arith.constant 0 : index
    %35 = vector.load %arg3[%c3, %c0_11, %c0_12] : memref<8x32x128xf32, #tpu.memory_space<vmem>>, vector<1x32x128xf32>
    %36 = vector.shape_cast %35 : vector<1x32x128xf32> to vector<32x128xf32>
    %cst_13 = arith.constant dense<0.000000e+00> : vector<8x128xf32>
    %37 = tpu.matmul %34, %36, %cst_13 {dimension_numbers = #tpu.dot_dimension_numbers<[1], [0], [0], [1], [0, 0, 1, 1], [], []>} : vector<8x32xf32>, vector<32x128xf32>, vector<8x128xf32> -> vector<8x128xf32>
    %38 = arith.addf %29, %37 : vector<8x128xf32>
    %39 = vector.extract_strided_slice %0 {offsets = [0, 4], sizes = [8, 1], strides = [1, 1]} : vector<8x8xi32> to vector<8x1xi32>
    %40 = vector.broadcast %39 : vector<8x1xi32> to vector<8x32xi32>
    %41 = arith.cmpi eq, %40, %1 : vector<8x32xi32>
    %42 = arith.extui %41 : vector<8x32xi1> to vector<8x32xi32>
    %43 = arith.sitofp %42 : vector<8x32xi32> to vector<8x32xf32>
    %c4 = arith.constant 4 : index
    %c0_14 = arith.constant 0 : index
    %c0_15 = arith.constant 0 : index
    %44 = vector.load %arg3[%c4, %c0_14, %c0_15] : memref<8x32x128xf32, #tpu.memory_space<vmem>>, vector<1x32x128xf32>
    %45 = vector.shape_cast %44 : vector<1x32x128xf32> to vector<32x128xf32>
    %cst_16 = arith.constant dense<0.000000e+00> : vector<8x128xf32>
    %46 = tpu.matmul %43, %45, %cst_16 {dimension_numbers = #tpu.dot_dimension_numbers<[1], [0], [0], [1], [0, 0, 1, 1], [], []>} : vector<8x32xf32>, vector<32x128xf32>, vector<8x128xf32> -> vector<8x128xf32>
    %47 = arith.addf %38, %46 : vector<8x128xf32>
    %48 = vector.extract_strided_slice %0 {offsets = [0, 5], sizes = [8, 1], strides = [1, 1]} : vector<8x8xi32> to vector<8x1xi32>
    %49 = vector.broadcast %48 : vector<8x1xi32> to vector<8x32xi32>
    %50 = arith.cmpi eq, %49, %1 : vector<8x32xi32>
    %51 = arith.extui %50 : vector<8x32xi1> to vector<8x32xi32>
    %52 = arith.sitofp %51 : vector<8x32xi32> to vector<8x32xf32>
    %c5 = arith.constant 5 : index
    %c0_17 = arith.constant 0 : index
    %c0_18 = arith.constant 0 : index
    %53 = vector.load %arg3[%c5, %c0_17, %c0_18] : memref<8x32x128xf32, #tpu.memory_space<vmem>>, vector<1x32x128xf32>
    %54 = vector.shape_cast %53 : vector<1x32x128xf32> to vector<32x128xf32>
    %cst_19 = arith.constant dense<0.000000e+00> : vector<8x128xf32>
    %55 = tpu.matmul %52, %54, %cst_19 {dimension_numbers = #tpu.dot_dimension_numbers<[1], [0], [0], [1], [0, 0, 1, 1], [], []>} : vector<8x32xf32>, vector<32x128xf32>, vector<8x128xf32> -> vector<8x128xf32>
    %56 = arith.addf %47, %55 : vector<8x128xf32>
    %57 = vector.extract_strided_slice %0 {offsets = [0, 6], sizes = [8, 1], strides = [1, 1]} : vector<8x8xi32> to vector<8x1xi32>
    %58 = vector.broadcast %57 : vector<8x1xi32> to vector<8x32xi32>
    %59 = arith.cmpi eq, %58, %1 : vector<8x32xi32>
    %60 = arith.extui %59 : vector<8x32xi1> to vector<8x32xi32>
    %61 = arith.sitofp %60 : vector<8x32xi32> to vector<8x32xf32>
    %c6 = arith.constant 6 : index
    %c0_20 = arith.constant 0 : index
    %c0_21 = arith.constant 0 : index
    %62 = vector.load %arg3[%c6, %c0_20, %c0_21] : memref<8x32x128xf32, #tpu.memory_space<vmem>>, vector<1x32x128xf32>
    %63 = vector.shape_cast %62 : vector<1x32x128xf32> to vector<32x128xf32>
    %cst_22 = arith.constant dense<0.000000e+00> : vector<8x128xf32>
    %64 = tpu.matmul %61, %63, %cst_22 {dimension_numbers = #tpu.dot_dimension_numbers<[1], [0], [0], [1], [0, 0, 1, 1], [], []>} : vector<8x32xf32>, vector<32x128xf32>, vector<8x128xf32> -> vector<8x128xf32>
    %65 = arith.addf %56, %64 : vector<8x128xf32>
    %66 = vector.extract_strided_slice %0 {offsets = [0, 7], sizes = [8, 1], strides = [1, 1]} : vector<8x8xi32> to vector<8x1xi32>
    %67 = vector.broadcast %66 : vector<8x1xi32> to vector<8x32xi32>
    %68 = arith.cmpi eq, %67, %1 : vector<8x32xi32>
    %69 = arith.extui %68 : vector<8x32xi1> to vector<8x32xi32>
    %70 = arith.sitofp %69 : vector<8x32xi32> to vector<8x32xf32>
    %c7 = arith.constant 7 : index
    %c0_23 = arith.constant 0 : index
    %c0_24 = arith.constant 0 : index
    %71 = vector.load %arg3[%c7, %c0_23, %c0_24] : memref<8x32x128xf32, #tpu.memory_space<vmem>>, vector<1x32x128xf32>
    %72 = vector.shape_cast %71 : vector<1x32x128xf32> to vector<32x128xf32>
    %cst_25 = arith.constant dense<0.000000e+00> : vector<8x128xf32>
    %73 = tpu.matmul %70, %72, %cst_25 {dimension_numbers = #tpu.dot_dimension_numbers<[1], [0], [0], [1], [0, 0, 1, 1], [], []>} : vector<8x32xf32>, vector<32x128xf32>, vector<8x128xf32> -> vector<8x128xf32>
    %74 = arith.addf %65, %73 : vector<8x128xf32>
    %c0_26 = arith.constant 0 : index
    %c0_27 = arith.constant 0 : index
    %75 = vector.load %arg4[%c0_26, %c0_27] : memref<1x128xf32, #tpu.memory_space<vmem>>, vector<1x128xf32>
    %76 = vector.broadcast %75 : vector<1x128xf32> to vector<8x128xf32>
    %77 = arith.addf %74, %76 : vector<8x128xf32>
    %cst_28 = arith.constant 0.000000e+00 : f32
    %78 = vector.broadcast %cst_28 : f32 to vector<8x128xf32>
    %79 = arith.maximumf %77, %78 : vector<8x128xf32>
    %c0_29 = arith.constant 0 : index
    %c0_30 = arith.constant 0 : index
    %80 = vector.load %arg5[%c0_29, %c0_30] : memref<128x128xf32, #tpu.memory_space<vmem>>, vector<128x128xf32>
    %cst_31 = arith.constant dense<0.000000e+00> : vector<8x128xf32>
    %81 = tpu.matmul %79, %80, %cst_31 {dimension_numbers = #tpu.dot_dimension_numbers<[1], [0], [0], [1], [0, 0, 1, 1], [], []>} : vector<8x128xf32>, vector<128x128xf32>, vector<8x128xf32> -> vector<8x128xf32>
    %c0_32 = arith.constant 0 : index
    %c0_33 = arith.constant 0 : index
    %82 = vector.load %arg6[%c0_32, %c0_33] : memref<1x128xf32, #tpu.memory_space<vmem>>, vector<1x128xf32>
    %83 = vector.broadcast %82 : vector<1x128xf32> to vector<8x128xf32>
    %84 = arith.addf %81, %83 : vector<8x128xf32>
    %cst_34 = arith.constant 0.000000e+00 : f32
    %85 = vector.broadcast %cst_34 : f32 to vector<8x128xf32>
    %86 = arith.maximumf %84, %85 : vector<8x128xf32>
    %c0_35 = arith.constant 0 : index
    %c0_36 = arith.constant 0 : index
    %87 = vector.load %arg2[%c0_35, %c0_36] : memref<8x6xf32, #tpu.memory_space<vmem>>, vector<8x6xf32>
    %c0_37 = arith.constant 0 : index
    %c0_38 = arith.constant 0 : index
    %88 = vector.load %arg7[%c0_37, %c0_38] : memref<6x128xf32, #tpu.memory_space<vmem>>, vector<6x128xf32>
    %cst_39 = arith.constant dense<0.000000e+00> : vector<8x128xf32>
    %89 = tpu.matmul %87, %88, %cst_39 {dimension_numbers = #tpu.dot_dimension_numbers<[1], [0], [0], [1], [0, 0, 1, 1], [], []>} : vector<8x6xf32>, vector<6x128xf32>, vector<8x128xf32> -> vector<8x128xf32>
    %c0_40 = arith.constant 0 : index
    %c0_41 = arith.constant 0 : index
    %90 = vector.load %arg8[%c0_40, %c0_41] : memref<1x128xf32, #tpu.memory_space<vmem>>, vector<1x128xf32>
    %91 = vector.broadcast %90 : vector<1x128xf32> to vector<8x128xf32>
    %92 = arith.addf %89, %91 : vector<8x128xf32>
    %cst_42 = arith.constant 0.000000e+00 : f32
    %93 = vector.broadcast %cst_42 : f32 to vector<8x128xf32>
    %94 = arith.maximumf %92, %93 : vector<8x128xf32>
    %c0_43 = arith.constant 0 : index
    %c0_44 = arith.constant 0 : index
    %95 = vector.load %arg9[%c0_43, %c0_44] : memref<128x128xf32, #tpu.memory_space<vmem>>, vector<128x128xf32>
    %cst_45 = arith.constant dense<0.000000e+00> : vector<8x128xf32>
    %96 = tpu.matmul %94, %95, %cst_45 {dimension_numbers = #tpu.dot_dimension_numbers<[1], [0], [0], [1], [0, 0, 1, 1], [], []>} : vector<8x128xf32>, vector<128x128xf32>, vector<8x128xf32> -> vector<8x128xf32>
    %c0_46 = arith.constant 0 : index
    %c0_47 = arith.constant 0 : index
    %97 = vector.load %arg10[%c0_46, %c0_47] : memref<1x128xf32, #tpu.memory_space<vmem>>, vector<1x128xf32>
    %98 = vector.broadcast %97 : vector<1x128xf32> to vector<8x128xf32>
    %99 = arith.addf %96, %98 : vector<8x128xf32>
    %cst_48 = arith.constant 0.000000e+00 : f32
    %100 = vector.broadcast %cst_48 : f32 to vector<8x128xf32>
    %101 = arith.maximumf %99, %100 : vector<8x128xf32>
    %c0_49 = arith.constant 0 : index
    %c0_50 = arith.constant 0 : index
    %102 = vector.load %arg11[%c0_49, %c0_50] : memref<128x128xf32, #tpu.memory_space<vmem>>, vector<128x128xf32>
    %cst_51 = arith.constant dense<0.000000e+00> : vector<8x128xf32>
    %103 = tpu.matmul %86, %102, %cst_51 {dimension_numbers = #tpu.dot_dimension_numbers<[1], [0], [0], [1], [0, 0, 1, 1], [], []>} : vector<8x128xf32>, vector<128x128xf32>, vector<8x128xf32> -> vector<8x128xf32>
    %c0_52 = arith.constant 0 : index
    %c0_53 = arith.constant 0 : index
    %104 = vector.load %arg12[%c0_52, %c0_53] : memref<128x128xf32, #tpu.memory_space<vmem>>, vector<128x128xf32>
    %cst_54 = arith.constant dense<0.000000e+00> : vector<8x128xf32>
    %105 = tpu.matmul %101, %104, %cst_54 {dimension_numbers = #tpu.dot_dimension_numbers<[1], [0], [0], [1], [0, 0, 1, 1], [], []>} : vector<8x128xf32>, vector<128x128xf32>, vector<8x128xf32> -> vector<8x128xf32>
    %106 = arith.addf %103, %105 : vector<8x128xf32>
    %c0_55 = arith.constant 0 : index
    %c0_56 = arith.constant 0 : index
    %107 = vector.load %arg13[%c0_55, %c0_56] : memref<1x128xf32, #tpu.memory_space<vmem>>, vector<1x128xf32>
    %108 = vector.broadcast %107 : vector<1x128xf32> to vector<8x128xf32>
    %109 = arith.addf %106, %108 : vector<8x128xf32>
    %c0_57 = arith.constant 0 : index
    %c0_58 = arith.constant 0 : index
    %110 = vector.load %arg14[%c0_57, %c0_58] : memref<8x128xf32, #tpu.memory_space<vmem>>, vector<8x128xf32>
    tpu.vector_store %arg14[%c0_57, %c0_58], %109 {strides = array<i32>} : memref<8x128xf32, #tpu.memory_space<vmem>>, vector<8x128xf32>,
    return
  }
  func.func @transform_0(%arg0: i32) -> (i32, i32) {
    %c0_i32 = arith.constant 0 : i32
    %c0_i32_0 = arith.constant 0 : i32
    return %arg0, %c0_i32 : i32, i32
  }
  func.func @transform_1(%arg0: i32) -> (i32, i32) {
    %c0_i32 = arith.constant 0 : i32
    %c0_i32_0 = arith.constant 0 : i32
    return %arg0, %c0_i32 : i32, i32
  }
  func.func @transform_2(%arg0: i32) -> (i32, i32, i32) {
    %c0_i32 = arith.constant 0 : i32
    %c0_i32_0 = arith.constant 0 : i32
    %c0_i32_1 = arith.constant 0 : i32
    %c0_i32_2 = arith.constant 0 : i32
    return %c0_i32, %c0_i32_0, %c0_i32_1 : i32, i32, i32
  }
  func.func @transform_3(%arg0: i32) -> (i32, i32) {
    %c0_i32 = arith.constant 0 : i32
    %c0_i32_0 = arith.constant 0 : i32
    %c0_i32_1 = arith.constant 0 : i32
    return %c0_i32, %c0_i32_0 : i32, i32
  }
  func.func @transform_4(%arg0: i32) -> (i32, i32) {
    %c0_i32 = arith.constant 0 : i32
    %c0_i32_0 = arith.constant 0 : i32
    %c0_i32_1 = arith.constant 0 : i32
    return %c0_i32, %c0_i32_0 : i32, i32
  }
  func.func @transform_5(%arg0: i32) -> (i32, i32) {
    %c0_i32 = arith.constant 0 : i32
    %c0_i32_0 = arith.constant 0 : i32
    %c0_i32_1 = arith.constant 0 : i32
    return %c0_i32, %c0_i32_0 : i32, i32
  }
  func.func @transform_6(%arg0: i32) -> (i32, i32) {
    %c0_i32 = arith.constant 0 : i32
    %c0_i32_0 = arith.constant 0 : i32
    %c0_i32_1 = arith.constant 0 : i32
    return %c0_i32, %c0_i32_0 : i32, i32
  }
  func.func @transform_7(%arg0: i32) -> (i32, i32) {
    %c0_i32 = arith.constant 0 : i32
    %c0_i32_0 = arith.constant 0 : i32
    %c0_i32_1 = arith.constant 0 : i32
    return %c0_i32, %c0_i32_0 : i32, i32
  }
  func.func @transform_8(%arg0: i32) -> (i32, i32) {
    %c0_i32 = arith.constant 0 : i32
    %c0_i32_0 = arith.constant 0 : i32
    %c0_i32_1 = arith.constant 0 : i32
    return %c0_i32, %c0_i32_0 : i32, i32
  }
  func.func @transform_9(%arg0: i32) -> (i32, i32) {
    %c0_i32 = arith.constant 0 : i32
    %c0_i32_0 = arith.constant 0 : i32
    %c0_i32_1 = arith.constant 0 : i32
    return %c0_i32, %c0_i32_0 : i32, i32
  }
  func.func @transform_10(%arg0: i32) -> (i32, i32) {
    %c0_i32 = arith.constant 0 : i32
    %c0_i32_0 = arith.constant 0 : i32
    %c0_i32_1 = arith.constant 0 : i32
    return %c0_i32, %c0_i32_0 : i32, i32
  }
  func.func @transform_11(%arg0: i32) -> (i32, i32) {
    %c0_i32 = arith.constant 0 : i32
    %c0_i32_0 = arith.constant 0 : i32
    %c0_i32_1 = arith.constant 0 : i32
    return %c0_i32, %c0_i32_0 : i32, i32
  }
  func.func @transform_12(%arg0: i32) -> (i32, i32) {
    %c0_i32 = arith.constant 0 : i32
    %c0_i32_0 = arith.constant 0 : i32
    %c0_i32_1 = arith.constant 0 : i32
    return %c0_i32, %c0_i32_0 : i32, i32
  }
  func.func @transform_13(%arg0: i32) -> (i32, i32) {
    %c0_i32 = arith.constant 0 : i32
    %c0_i32_0 = arith.constant 0 : i32
    return %arg0, %c0_i32 : i32, i32
  }
}

</mosaic_0001>

<llo_original>
// kernel: tpu_custom_call.1
$region0: #{tpu_custom_call.1}
  #allocation0 [shape = 'u32[]', space=smem, size = 0x4, offset = 0x4, fixed_abs, tag = 'smem constant byte address 0x4 - core index']
  #allocation1 [shape = 'u32[144,128]{1,0:T(1,128)}', space=vmem, size = 0x12000, scoped, tag = 'internal scratch']
  %s0 = inlined_call_operand.hbm [shape: s32[8,8], index: 0, kind: input, shape index: {}]
  %s1 = inlined_call_operand.hbm [shape: f32[8,6], index: 1, kind: input, shape index: {}]
  %s2 = inlined_call_operand.hbm [shape: f32[8,32,128], index: 2, kind: input, shape index: {}]
  %s3 = inlined_call_operand.vmem [shape: f32[1,128], index: 3, kind: input, shape index: {}]
  %s4 = inlined_call_operand.hbm [shape: f32[128,128], index: 4, kind: input, shape index: {}]
  %s5 = inlined_call_operand.vmem [shape: f32[1,128], index: 5, kind: input, shape index: {}]
  %s6 = inlined_call_operand.vmem [shape: f32[6,128], index: 6, kind: input, shape index: {}]
  %s7 = inlined_call_operand.vmem [shape: f32[1,128], index: 7, kind: input, shape index: {}]
  %s8 = inlined_call_operand.hbm [shape: f32[128,128], index: 8, kind: input, shape index: {}]
  %s9 = inlined_call_operand.vmem [shape: f32[1,128], index: 9, kind: input, shape index: {}]
  %s10 = inlined_call_operand.hbm [shape: f32[128,128], index: 10, kind: input, shape index: {}]
  %s11 = inlined_call_operand.hbm [shape: f32[128,128], index: 11, kind: input, shape index: {}]
  %s12 = inlined_call_operand.vmem [shape: f32[1,128], index: 12, kind: input, shape index: {}]
  %s13 = inlined_call_operand.hbm [shape: f32[8,128], index: 13, kind: output, shape index: {}]
  %s14 = sld [smem:[#allocation0]]
  $region90: #{tpu_custom_call.1} parent=0
    _
  %s16 = ssub.s32 1, %s14
  %s17 = scalar_select 0, %s16, %s14
  $region1: #{tpu_custom_call.1} parent=0
    #allocation2 [shape = 'u8[4096]{0}', space=vmem, size = 0x1000, scoped, tag = 'input window, operand 0, single buffered']
    #allocation3 [shape = 's32[1]{0}', space=sflag, size = 0x4, scoped, tag = 'scoped memory for tpu_custom_call.1']
    #allocation4 [shape = 's32[1]{0}', space=sflag, size = 0x4, scoped, tag = 'scoped memory for tpu_custom_call.1']
    #allocation5 [shape = 'u8[4096]{0}', space=vmem, size = 0x1000, scoped, tag = 'input window, operand 1, single buffered']
    #allocation6 [shape = 's32[1]{0}', space=sflag, size = 0x4, scoped, tag = 'scoped memory for tpu_custom_call.1']
    #allocation7 [shape = 'u8[131072]{0}', space=vmem, size = 0x20000, scoped, tag = 'input window, operand 2, single buffered']
    #allocation8 [shape = 'u8[65536]{0}', space=vmem, size = 0x10000, scoped, tag = 'input window, operand 4, single buffered']
    #allocation9 [shape = 's32[1]{0}', space=sflag, size = 0x4, scoped, tag = 'scoped memory for tpu_custom_call.1']
    #allocation10 [shape = 'u8[65536]{0}', space=vmem, size = 0x10000, scoped, tag = 'input window, operand 8, single buffered']
    #allocation11 [shape = 'u8[65536]{0}', space=vmem, size = 0x10000, scoped, tag = 'input window, operand 10, single buffered']
    #allocation12 [shape = 's32[1]{0}', space=sflag, size = 0x4, scoped, tag = 'scoped memory for tpu_custom_call.1']
    #allocation13 [shape = 'u8[65536]{0}', space=vmem, size = 0x10000, scoped, tag = 'input window, operand 11, single buffered']
    #allocation14 [shape = 'u8[4096]{0}', space=vmem, size = 0x1000, scoped, tag = 'output window, operand 0, single buffered']
    %18 = vsyncpa [#allocation3], 0
    %19 = vsyncpa [#allocation6], 0
    %20 = vsyncpa [#allocation9], 0
    %21 = vsyncpa [#allocation12], 0
    %22 = vsyncpa [#allocation4], 0
    // Predicated region
    $region2: #{tpu_custom_call.1} parent=1 // pred_check
      _
    $region3: #{tpu_custom_call.1} parent=1 // pred_check_branch
      %24 = sbr.rel (0) target = $region5
    $region4: #{tpu_custom_call.1} parent=1 // pred_region
      %s26 = ssub.s32 128, 128
      %27 = vsyncadd [#allocation3], %s26
      %s29 = sshll.u32 [#allocation2], 4
      %s30 = int_to_ptr.vmem [resolvable:$true] %s29
      %32 = dma.hbm_to_vmem [thread:$0]  %s0, 128, %s30, [#allocation3]
    $region5: #{tpu_custom_call.1} parent=1 // pred_fallthru
      _
    // Predicated region
    $region6: #{tpu_custom_call.1} parent=1 // pred_check
      _
    $region7: #{tpu_custom_call.1} parent=1 // pred_check_branch
      %34 = sbr.rel (0) target = $region9
    $region8: #{tpu_custom_call.1} parent=1 // pred_region
      %s36 = ssub.s32 128, 128
      %37 = vsyncadd [#allocation6], %s36
      %s39 = sshll.u32 [#allocation5], 4
      %s40 = int_to_ptr.vmem [resolvable:$true] %s39
      %42 = dma.hbm_to_vmem [thread:$0]  %s1, 128, %s40, [#allocation6]
    $region9: #{tpu_custom_call.1} parent=1 // pred_fallthru
      _
    // Predicated region
    $region10: #{tpu_custom_call.1} parent=1 // pred_check
      _
    $region11: #{tpu_custom_call.1} parent=1 // pred_check_branch
      %44 = sbr.rel (0) target = $region13
    $region12: #{tpu_custom_call.1} parent=1 // pred_region
      %s46 = ssub.s32 4096, 4096
      %47 = vsyncadd [#allocation6], %s46
      %s48 = sshll.u32 [#allocation7], 4
      %s49 = int_to_ptr.vmem [resolvable:$true] %s48
      %54 = dma.hbm_to_vmem [thread:$0]  %s2, 4096, %s49, [#allocation6], 128, 128, 8
    $region13: #{tpu_custom_call.1} parent=1 // pred_fallthru
      _
    // Predicated region
    $region14: #{tpu_custom_call.1} parent=1 // pred_check
      _
    $region15: #{tpu_custom_call.1} parent=1 // pred_check_branch
      %56 = sbr.rel (0) target = $region17
    $region16: #{tpu_custom_call.1} parent=1 // pred_region
      _
    $region17: #{tpu_custom_call.1} parent=1 // pred_fallthru
      _
    // Predicated region
    $region18: #{tpu_custom_call.1} parent=1 // pred_check
      _
    $region19: #{tpu_custom_call.1} parent=1 // pred_check_branch
      %58 = sbr.rel (0) target = $region21
    $region20: #{tpu_custom_call.1} parent=1 // pred_region
      %s60 = ssub.s32 2048, 2048
      %61 = vsyncadd [#allocation9], %s60
      %s62 = sshll.u32 [#allocation8], 4
      %s63 = int_to_ptr.vmem [resolvable:$true] %s62
      %68 = dma.hbm_to_vmem [thread:$0]  %s4, 2048, %s63, [#allocation9], 128, 128, 8
    $region21: #{tpu_custom_call.1} parent=1 // pred_fallthru
      _
    // Predicated region
    $region22: #{tpu_custom_call.1} parent=1 // pred_check
      _
    $region23: #{tpu_custom_call.1} parent=1 // pred_check_branch
      %70 = sbr.rel (0) target = $region25
    $region24: #{tpu_custom_call.1} parent=1 // pred_region
      _
    $region25: #{tpu_custom_call.1} parent=1 // pred_fallthru
      _
    // Predicated region
    $region26: #{tpu_custom_call.1} parent=1 // pred_check
      _
    $region27: #{tpu_custom_call.1} parent=1 // pred_check_branch
      %72 = sbr.rel (0) target = $region29
    $region28: #{tpu_custom_call.1} parent=1 // pred_region
      _
    $region29: #{tpu_custom_call.1} parent=1 // pred_fallthru
      _
    // Predicated region
    $region30: #{tpu_custom_call.1} parent=1 // pred_check
      _
    $region31: #{tpu_custom_call.1} parent=1 // pred_check_branch
      %74 = sbr.rel (0) target = $region33
    $region32: #{tpu_custom_call.1} parent=1 // pred_region
      _
    $region33: #{tpu_custom_call.1} parent=1 // pred_fallthru
      _
    // Predicated region
    $region34: #{tpu_custom_call.1} parent=1 // pred_check
      _
    $region35: #{tpu_custom_call.1} parent=1 // pred_check_branch
      %76 = sbr.rel (0) target = $region37
    $region36: #{tpu_custom_call.1} parent=1 // pred_region
      %s78 = ssub.s32 2048, 2048
      %79 = vsyncadd [#allocation9], %s78
      %s80 = sshll.u32 [#allocation10], 4
      %s81 = int_to_ptr.vmem [resolvable:$true] %s80
      %86 = dma.hbm_to_vmem [thread:$0]  %s8, 2048, %s81, [#allocation9], 128, 128, 8
    $region37: #{tpu_custom_call.1} parent=1 // pred_fallthru
      _
    // Predicated region
    $region38: #{tpu_custom_call.1} parent=1 // pred_check
      _
    $region39: #{tpu_custom_call.1} parent=1 // pred_check_branch
      %88 = sbr.rel (0) target = $region41
    $region40: #{tpu_custom_call.1} parent=1 // pred_region
      _
    $region41: #{tpu_custom_call.1} parent=1 // pred_fallthru
      _
    // Predicated region
    $region42: #{tpu_custom_call.1} parent=1 // pred_check
      _
    $region43: #{tpu_custom_call.1} parent=1 // pred_check_branch
      %90 = sbr.rel (0) target = $region45
    $region44: #{tpu_custom_call.1} parent=1 // pred_region
      %s92 = ssub.s32 2048, 2048
      %93 = vsyncadd [#allocation12], %s92
      %s94 = sshll.u32 [#allocation11], 4
      %s95 = int_to_ptr.vmem [resolvable:$true] %s94
      %100 = dma.hbm_to_vmem [thread:$0]  %s10, 2048, %s95, [#allocation12], 128, 128, 8
    $region45: #{tpu_custom_call.1} parent=1 // pred_fallthru
      _
    // Predicated region
    $region46: #{tpu_custom_call.1} parent=1 // pred_check
      _
    $region47: #{tpu_custom_call.1} parent=1 // pred_check_branch
      %102 = sbr.rel (0) target = $region49
    $region48: #{tpu_custom_call.1} parent=1 // pred_region
      %s104 = ssub.s32 2048, 2048
      %105 = vsyncadd [#allocation12], %s104
      %s106 = sshll.u32 [#allocation13], 4
      %s107 = int_to_ptr.vmem [resolvable:$true] %s106
      %112 = dma.hbm_to_vmem [thread:$0]  %s11, 2048, %s107, [#allocation12], 128, 128, 8
    $region49: #{tpu_custom_call.1} parent=1 // pred_fallthru
      _
    // Predicated region
    $region50: #{tpu_custom_call.1} parent=1 // pred_check
      _
    $region51: #{tpu_custom_call.1} parent=1 // pred_check_branch
      %114 = sbr.rel (0) target = $region53
    $region52: #{tpu_custom_call.1} parent=1 // pred_region
      _
    $region53: #{tpu_custom_call.1} parent=1 // pred_fallthru
      _
    // Predicated region
    $region54: #{tpu_custom_call.1} parent=1 // pred_check
      _
    $region55: #{tpu_custom_call.1} parent=1 // pred_check_branch
      %116 = sbr.rel (0) target = $region57
    $region56: #{tpu_custom_call.1} parent=1 // pred_region
      %117 = dma.done [#allocation3], 128
    $region57: #{tpu_custom_call.1} parent=1 // pred_fallthru
      _
    // Predicated region
    $region58: #{tpu_custom_call.1} parent=1 // pred_check
      _
    $region59: #{tpu_custom_call.1} parent=1 // pred_check_branch
      %119 = sbr.rel (0) target = $region61
    $region60: #{tpu_custom_call.1} parent=1 // pred_region
      %120 = dma.done [#allocation6], 128
    $region61: #{tpu_custom_call.1} parent=1 // pred_fallthru
      _
    // Predicated region
    $region62: #{tpu_custom_call.1} parent=1 // pred_check
      _
    $region63: #{tpu_custom_call.1} parent=1 // pred_check_branch
      %122 = sbr.rel (0) target = $region65
    $region64: #{tpu_custom_call.1} parent=1 // pred_region
      %123 = dma.done [#allocation6], 4096
    $region65: #{tpu_custom_call.1} parent=1 // pred_fallthru
      _
    // Predicated region
    $region66: #{tpu_custom_call.1} parent=1 // pred_check
      _
    $region67: #{tpu_custom_call.1} parent=1 // pred_check_branch
      %125 = sbr.rel (0) target = $region69
    $region68: #{tpu_custom_call.1} parent=1 // pred_region
      %126 = dma.done [#allocation9], 2048
    $region69: #{tpu_custom_call.1} parent=1 // pred_fallthru
      _
    // Predicated region
    $region70: #{tpu_custom_call.1} parent=1 // pred_check
      _
    $region71: #{tpu_custom_call.1} parent=1 // pred_check_branch
      %128 = sbr.rel (0) target = $region73
    $region72: #{tpu_custom_call.1} parent=1 // pred_region
      %129 = dma.done [#allocation9], 2048
    $region73: #{tpu_custom_call.1} parent=1 // pred_fallthru
      _
    // Predicated region
    $region74: #{tpu_custom_call.1} parent=1 // pred_check
      _
    $region75: #{tpu_custom_call.1} parent=1 // pred_check_branch
      %131 = sbr.rel (0) target = $region77
    $region76: #{tpu_custom_call.1} parent=1 // pred_region
      %132 = dma.done [#allocation12], 2048
    $region77: #{tpu_custom_call.1} parent=1 // pred_fallthru
      _
    // Predicated region
    $region78: #{tpu_custom_call.1} parent=1 // pred_check
      _
    $region79: #{tpu_custom_call.1} parent=1 // pred_check_branch
      %134 = sbr.rel (0) target = $region81
    $region80: #{tpu_custom_call.1} parent=1 // pred_region
      %135 = dma.done [#allocation12], 2048
    $region81: #{tpu_custom_call.1} parent=1 // pred_fallthru
      _
    %v136 = vld [vmem:[#allocation2] sm:$0xff]
    %v137 = vlaneseq
    %v138 = vand.u32 %v137, 127
    %139 = vset.pattern.permute.xlu0 0
    %140 = vperm.xlu0 %139, %v136
    %v141 = vpop.permute.xlu0 %140
    %vm142 = vcmp.eq.s32.totalorder %v141, %v138
    %v143 = vsel %vm142, 1, 0
    %v144 = vcvt.s32.f32 %v143
    %v145 = vld [vmem:[#allocation7] sm:$0xff]
    %v146 = vld [vmem:[#allocation7 + $0x8] sm:$0xff]
    %v147 = vld [vmem:[#allocation7 + $0x10] sm:$0xff]
    %v148 = vld [vmem:[#allocation7 + $0x18] sm:$0xff]
    %149 = vset.pattern.permute.xlu0 1
    %150 = vperm.xlu0 %149, %v136
    %v151 = vpop.permute.xlu0 %150
    %vm152 = vcmp.eq.s32.totalorder %v151, %v138
    %v153 = vsel %vm152, 1, 0
    %v154 = vcvt.s32.f32 %v153
    %s155 = scalar_lea.vmem [#allocation7], 32
    %v156 = vld [vmem:[%s155] sm:$0xff]
    %v157 = vld [vmem:[%s155 + $0x8] sm:$0xff]
    %v158 = vld [vmem:[%s155 + $0x10] sm:$0xff]
    %v159 = vld [vmem:[%s155 + $0x18] sm:$0xff]
    %vm160 = vcmask 261120
    %v162 = vsel %vm160, %v154, 0
    %164 = vmatprep.subr.mxu0 0.0
    %165 = vmatpush1.msra.mxu0 %v156
    %166 = vmatprep.subr.mxu0 0.0
    %167 = vmatpush1.msra.mxu0 %v157
    %168 = vmatprep.subr.mxu0 0.0
    %169 = vmatpush1.msra.mxu0 %v158
    %170 = vmatprep.subr.mxu0 0.0
    %171 = vmatpush1.msra.mxu0 %v159
    %172 = vmatprep.subr.mxu0 0.0
    %173 = vmatpush1.msra.mxu0 0.0
    %174 = vmatprep.subr.mxu0 0.0
    %175 = vmatpush1.msra.mxu0 0.0
    %176 = vmatprep.subr.mxu0 0.0
    %177 = vmatpush1.msra.mxu0 0.0
    %178 = vmatprep.subr.mxu0 0.0
    %179 = vmatpush1.msra.mxu0 0.0
    %180 = vmatprep.subr.mxu0 0.0
    %181 = vmatpush1.msra.mxu0 0.0
    %182 = vmatprep.subr.mxu0 0.0
    %183 = vmatpush1.msra.mxu0 0.0
    %184 = vmatprep.subr.mxu0 0.0
    %185 = vmatpush1.msra.mxu0 0.0
    %186 = vmatprep.subr.mxu0 0.0
    %187 = vmatpush1.msra.mxu0 0.0
    %188 = vmatprep.subr.mxu0 0.0
    %189 = vmatpush1.msra.mxu0 0.0
    %190 = vmatprep.subr.mxu0 0.0
    %191 = vmatpush1.msra.mxu0 0.0
    %192 = vmatprep.subr.mxu0 0.0
    %193 = vmatpush1.msra.mxu0 0.0
    %194 = vmatprep.subr.mxu0 0.0
    %195 = vmatpush1.msra.mxu0 0.0
    %196 = vmatprep.subr.mxu0 0.0
    %197 = vmatpush1.msra.mxu0 0.0
    %198 = vmatprep.subr.mxu0 0.0
    %199 = vmatpush1.msra.mxu0 0.0
    %200 = vmatprep.subr.mxu0 0.0
    %201 = vmatpush1.msra.mxu0 0.0
    %202 = vmatprep.subr.mxu0 0.0
    %203 = vmatpush1.msra.mxu0 0.0
    %204 = vmatprep.subr.mxu0 0.0
    %205 = vmatpush1.msra.mxu0 0.0
    %206 = vmatprep.subr.mxu0 0.0
    %207 = vmatpush1.msra.mxu0 0.0
    %208 = vmatprep.subr.mxu0 0.0
    %209 = vmatpush1.msra.mxu0 0.0
    %210 = vmatprep.subr.mxu0 0.0
    %211 = vmatpush1.msra.mxu0 0.0
    %212 = vmatprep.subr.mxu0 0.0
    %213 = vmatpush1.msra.mxu0 0.0
    %214 = vmatprep.subr.mxu0 0.0
    %215 = vmatpush1.msra.mxu0 0.0
    %216 = vmatprep.subr.mxu0 0.0
    %217 = vmatpush1.msra.mxu0 0.0
    %218 = vmatprep.subr.mxu0 0.0
    %219 = vmatpush1.msra.mxu0 0.0
    %220 = vmatprep.subr.mxu0 0.0
    %221 = vmatpush1.msra.mxu0 0.0
    %222 = vmatprep.subr.mxu0 0.0
    %223 = vmatpush1.msra.mxu0 0.0
    %224 = vmatprep.subr.mxu0 0.0
    %225 = vmatpush1.msra.mxu0 0.0
    %226 = vmatprep.subr.mxu0 0.0
    %227 = vmatpush1.msra.mxu0 0.0
    %228 = vmatprep.mubr.f32.mxu0 0.0
    %229 = vmatmul.mubr.f32.gmra.mrb[0].mxu0 %v162
    %v230 = vpop.f32.mrb[0].mxu0
    %v231 = vadd.f32 0.0, %v230
    %v232 = vpop.f32.mrb[0].mxu0
    %233 = vdwg.mxu0
    %v235 = vsel %vm160, %v144, 0
    %237 = vmatprep.subr.mxu0 0.0
    %238 = vmatpush1.msra.mxu0 %v145
    %239 = vmatprep.subr.mxu0 0.0
    %240 = vmatpush1.msra.mxu0 %v146
    %241 = vmatprep.subr.mxu0 0.0
    %242 = vmatpush1.msra.mxu0 %v147
    %243 = vmatprep.subr.mxu0 0.0
    %244 = vmatpush1.msra.mxu0 %v148
    %245 = vmatprep.subr.mxu0 0.0
    %246 = vmatpush1.msra.mxu0 0.0
    %247 = vmatprep.subr.mxu0 0.0
    %248 = vmatpush1.msra.mxu0 0.0
    %249 = vmatprep.subr.mxu0 0.0
    %250 = vmatpush1.msra.mxu0 0.0
    %251 = vmatprep.subr.mxu0 0.0
    %252 = vmatpush1.msra.mxu0 0.0
    %253 = vmatprep.subr.mxu0 0.0
    %254 = vmatpush1.msra.mxu0 0.0
    %255 = vmatprep.subr.mxu0 0.0
    %256 = vmatpush1.msra.mxu0 0.0
    %257 = vmatprep.subr.mxu0 0.0
    %258 = vmatpush1.msra.mxu0 0.0
    %259 = vmatprep.subr.mxu0 0.0
    %260 = vmatpush1.msra.mxu0 0.0
    %261 = vmatprep.subr.mxu0 0.0
    %262 = vmatpush1.msra.mxu0 0.0
    %263 = vmatprep.subr.mxu0 0.0
    %264 = vmatpush1.msra.mxu0 0.0
    %265 = vmatprep.subr.mxu0 0.0
    %266 = vmatpush1.msra.mxu0 0.0
    %267 = vmatprep.subr.mxu0 0.0
    %268 = vmatpush1.msra.mxu0 0.0
    %269 = vmatprep.subr.mxu0 0.0
    %270 = vmatpush1.msra.mxu0 0.0
    %271 = vmatprep.subr.mxu0 0.0
    %272 = vmatpush1.msra.mxu0 0.0
    %273 = vmatprep.subr.mxu0 0.0
    %274 = vmatpush1.msra.mxu0 0.0
    %275 = vmatprep.subr.mxu0 0.0
    %276 = vmatpush1.msra.mxu0 0.0
    %277 = vmatprep.subr.mxu0 0.0
    %278 = vmatpush1.msra.mxu0 0.0
    %279 = vmatprep.subr.mxu0 0.0
    %280 = vmatpush1.msra.mxu0 0.0
    %281 = vmatprep.subr.mxu0 0.0
    %282 = vmatpush1.msra.mxu0 0.0
    %283 = vmatprep.subr.mxu0 0.0
    %284 = vmatpush1.msra.mxu0 0.0
    %285 = vmatprep.subr.mxu0 0.0
    %286 = vmatpush1.msra.mxu0 0.0
    %287 = vmatprep.subr.mxu0 0.0
    %288 = vmatpush1.msra.mxu0 0.0
    %289 = vmatprep.subr.mxu0 0.0
    %290 = vmatpush1.msra.mxu0 0.0
    %291 = vmatprep.subr.mxu0 0.0
    %292 = vmatpush1.msra.mxu0 0.0
    %293 = vmatprep.subr.mxu0 0.0
    %294 = vmatpush1.msra.mxu0 0.0
    %295 = vmatprep.subr.mxu0 0.0
    %296 = vmatpush1.msra.mxu0 0.0
    %297 = vmatprep.subr.mxu0 0.0
    %298 = vmatpush1.msra.mxu0 0.0
    %299 = vmatprep.subr.mxu0 0.0
    %300 = vmatpush1.msra.mxu0 0.0
    %301 = vmatprep.mubr.f32.mxu0 0.0
    %302 = vmatmul.mubr.f32.gmra.mrb[0].mxu0 %v235
    %v303 = vpop.f32.mrb[0].mxu0
    %v304 = vadd.f32 %v231, %v303
    %v305 = vpop.f32.mrb[0].mxu0
    %306 = vdwg.mxu0
    %307 = vset.pattern.permute.xlu0 2
    %308 = vperm.xlu0 %307, %v136
    %v309 = vpop.permute.xlu0 %308
    %vm310 = vcmp.eq.s32.totalorder %v309, %v138
    %v311 = vsel %vm310, 1, 0
    %v312 = vcvt.s32.f32 %v311
    %s313 = scalar_lea.vmem [#allocation7], 64
    %v314 = vld [vmem:[%s313] sm:$0xff]
    %v315 = vld [vmem:[%s313 + $0x8] sm:$0xff]
    %v316 = vld [vmem:[%s313 + $0x10] sm:$0xff]
    %v317 = vld [vmem:[%s313 + $0x18] sm:$0xff]
    %v319 = vsel %vm160, %v312, 0
    %321 = vmatprep.subr.mxu0 0.0
    %322 = vmatpush1.msra.mxu0 %v314
    %323 = vmatprep.subr.mxu0 0.0
    %324 = vmatpush1.msra.mxu0 %v315
    %325 = vmatprep.subr.mxu0 0.0
    %326 = vmatpush1.msra.mxu0 %v316
    %327 = vmatprep.subr.mxu0 0.0
    %328 = vmatpush1.msra.mxu0 %v317
    %329 = vmatprep.subr.mxu0 0.0
    %330 = vmatpush1.msra.mxu0 0.0
    %331 = vmatprep.subr.mxu0 0.0
    %332 = vmatpush1.msra.mxu0 0.0
    %333 = vmatprep.subr.mxu0 0.0
    %334 = vmatpush1.msra.mxu0 0.0
    %335 = vmatprep.subr.mxu0 0.0
    %336 = vmatpush1.msra.mxu0 0.0
    %337 = vmatprep.subr.mxu0 0.0
    %338 = vmatpush1.msra.mxu0 0.0
    %339 = vmatprep.subr.mxu0 0.0
    %340 = vmatpush1.msra.mxu0 0.0
    %341 = vmatprep.subr.mxu0 0.0
    %342 = vmatpush1.msra.mxu0 0.0
    %343 = vmatprep.subr.mxu0 0.0
    %344 = vmatpush1.msra.mxu0 0.0
    %345 = vmatprep.subr.mxu0 0.0
    %346 = vmatpush1.msra.mxu0 0.0
    %347 = vmatprep.subr.mxu0 0.0
    %348 = vmatpush1.msra.mxu0 0.0
    %349 = vmatprep.subr.mxu0 0.0
    %350 = vmatpush1.msra.mxu0 0.0
    %351 = vmatprep.subr.mxu0 0.0
    %352 = vmatpush1.msra.mxu0 0.0
    %353 = vmatprep.subr.mxu0 0.0
    %354 = vmatpush1.msra.mxu0 0.0
    %355 = vmatprep.subr.mxu0 0.0
    %356 = vmatpush1.msra.mxu0 0.0
    %357 = vmatprep.subr.mxu0 0.0
    %358 = vmatpush1.msra.mxu0 0.0
    %359 = vmatprep.subr.mxu0 0.0
    %360 = vmatpush1.msra.mxu0 0.0
    %361 = vmatprep.subr.mxu0 0.0
    %362 = vmatpush1.msra.mxu0 0.0
    %363 = vmatprep.subr.mxu0 0.0
    %364 = vmatpush1.msra.mxu0 0.0
    %365 = vmatprep.subr.mxu0 0.0
    %366 = vmatpush1.msra.mxu0 0.0
    %367 = vmatprep.subr.mxu0 0.0
    %368 = vmatpush1.msra.mxu0 0.0
    %369 = vmatprep.subr.mxu0 0.0
    %370 = vmatpush1.msra.mxu0 0.0
    %371 = vmatprep.subr.mxu0 0.0
    %372 = vmatpush1.msra.mxu0 0.0
    %373 = vmatprep.subr.mxu0 0.0
    %374 = vmatpush1.msra.mxu0 0.0
    %375 = vmatprep.subr.mxu0 0.0
    %376 = vmatpush1.msra.mxu0 0.0
    %377 = vmatprep.subr.mxu0 0.0
    %378 = vmatpush1.msra.mxu0 0.0
    %379 = vmatprep.subr.mxu0 0.0
    %380 = vmatpush1.msra.mxu0 0.0
    %381 = vmatprep.subr.mxu0 0.0
    %382 = vmatpush1.msra.mxu0 0.0
    %383 = vmatprep.subr.mxu0 0.0
    %384 = vmatpush1.msra.mxu0 0.0
    %385 = vmatprep.mubr.f32.mxu0 0.0
    %386 = vmatmul.mubr.f32.gmra.mrb[0].mxu0 %v319
    %v387 = vpop.f32.mrb[0].mxu0
    %v388 = vadd.f32 0.0, %v387
    %v389 = vpop.f32.mrb[0].mxu0
    %390 = vdwg.mxu0
    %v391 = vadd.f32 %v304, %v388
    %392 = vset.pattern.permute.xlu0 3
    %393 = vperm.xlu0 %392, %v136
    %v394 = vpop.permute.xlu0 %393
    %vm395 = vcmp.eq.s32.totalorder %v394, %v138
    %v396 = vsel %vm395, 1, 0
    %v397 = vcvt.s32.f32 %v396
    %s398 = scalar_lea.vmem [#allocation7], 96
    %v399 = vld [vmem:[%s398] sm:$0xff]
    %v400 = vld [vmem:[%s398 + $0x8] sm:$0xff]
    %v401 = vld [vmem:[%s398 + $0x10] sm:$0xff]
    %v402 = vld [vmem:[%s398 + $0x18] sm:$0xff]
    %v404 = vsel %vm160, %v397, 0
    %406 = vmatprep.subr.mxu0 0.0
    %407 = vmatpush1.msra.mxu0 %v399
    %408 = vmatprep.subr.mxu0 0.0
    %409 = vmatpush1.msra.mxu0 %v400
    %410 = vmatprep.subr.mxu0 0.0
    %411 = vmatpush1.msra.mxu0 %v401
    %412 = vmatprep.subr.mxu0 0.0
    %413 = vmatpush1.msra.mxu0 %v402
    %414 = vmatprep.subr.mxu0 0.0
    %415 = vmatpush1.msra.mxu0 0.0
    %416 = vmatprep.subr.mxu0 0.0
    %417 = vmatpush1.msra.mxu0 0.0
    %418 = vmatprep.subr.mxu0 0.0
    %419 = vmatpush1.msra.mxu0 0.0
    %420 = vmatprep.subr.mxu0 0.0
    %421 = vmatpush1.msra.mxu0 0.0
    %422 = vmatprep.subr.mxu0 0.0
    %423 = vmatpush1.msra.mxu0 0.0
    %424 = vmatprep.subr.mxu0 0.0
    %425 = vmatpush1.msra.mxu0 0.0
    %426 = vmatprep.subr.mxu0 0.0
    %427 = vmatpush1.msra.mxu0 0.0
    %428 = vmatprep.subr.mxu0 0.0
    %429 = vmatpush1.msra.mxu0 0.0
    %430 = vmatprep.subr.mxu0 0.0
    %431 = vmatpush1.msra.mxu0 0.0
    %432 = vmatprep.subr.mxu0 0.0
    %433 = vmatpush1.msra.mxu0 0.0
    %434 = vmatprep.subr.mxu0 0.0
    %435 = vmatpush1.msra.mxu0 0.0
    %436 = vmatprep.subr.mxu0 0.0
    %437 = vmatpush1.msra.mxu0 0.0
    %438 = vmatprep.subr.mxu0 0.0
    %439 = vmatpush1.msra.mxu0 0.0
    %440 = vmatprep.subr.mxu0 0.0
    %441 = vmatpush1.msra.mxu0 0.0
    %442 = vmatprep.subr.mxu0 0.0
    %443 = vmatpush1.msra.mxu0 0.0
    %444 = vmatprep.subr.mxu0 0.0
    %445 = vmatpush1.msra.mxu0 0.0
    %446 = vmatprep.subr.mxu0 0.0
    %447 = vmatpush1.msra.mxu0 0.0
    %448 = vmatprep.subr.mxu0 0.0
    %449 = vmatpush1.msra.mxu0 0.0
    %450 = vmatprep.subr.mxu0 0.0
    %451 = vmatpush1.msra.mxu0 0.0
    %452 = vmatprep.subr.mxu0 0.0
    %453 = vmatpush1.msra.mxu0 0.0
    %454 = vmatprep.subr.mxu0 0.0
    %455 = vmatpush1.msra.mxu0 0.0
    %456 = vmatprep.subr.mxu0 0.0
    %457 = vmatpush1.msra.mxu0 0.0
    %458 = vmatprep.subr.mxu0 0.0
    %459 = vmatpush1.msra.mxu0 0.0
    %460 = vmatprep.subr.mxu0 0.0
    %461 = vmatpush1.msra.mxu0 0.0
    %462 = vmatprep.subr.mxu0 0.0
    %463 = vmatpush1.msra.mxu0 0.0
    %464 = vmatprep.subr.mxu0 0.0
    %465 = vmatpush1.msra.mxu0 0.0
    %466 = vmatprep.subr.mxu0 0.0
    %467 = vmatpush1.msra.mxu0 0.0
    %468 = vmatprep.subr.mxu0 0.0
    %469 = vmatpush1.msra.mxu0 0.0
    %470 = vmatprep.mubr.f32.mxu0 0.0
    %471 = vmatmul.mubr.f32.gmra.mrb[0].mxu0 %v404
    %v472 = vpop.f32.mrb[0].mxu0
    %v473 = vadd.f32 0.0, %v472
    %v474 = vpop.f32.mrb[0].mxu0
    %475 = vdwg.mxu0
    %v476 = vadd.f32 %v391, %v473
    %477 = vset.pattern.permute.xlu0 4
    %478 = vperm.xlu0 %477, %v136
    %v479 = vpop.permute.xlu0 %478
    %vm480 = vcmp.eq.s32.totalorder %v479, %v138
    %v481 = vsel %vm480, 1, 0
    %v482 = vcvt.s32.f32 %v481
    %s483 = scalar_lea.vmem [#allocation7], 128
    %v484 = vld [vmem:[%s483] sm:$0xff]
    %v485 = vld [vmem:[%s483 + $0x8] sm:$0xff]
    %v486 = vld [vmem:[%s483 + $0x10] sm:$0xff]
    %v487 = vld [vmem:[%s483 + $0x18] sm:$0xff]
    %v489 = vsel %vm160, %v482, 0
    %491 = vmatprep.subr.mxu0 0.0
    %492 = vmatpush1.msra.mxu0 %v484
    %493 = vmatprep.subr.mxu0 0.0
    %494 = vmatpush1.msra.mxu0 %v485
    %495 = vmatprep.subr.mxu0 0.0
    %496 = vmatpush1.msra.mxu0 %v486
    %497 = vmatprep.subr.mxu0 0.0
    %498 = vmatpush1.msra.mxu0 %v487
    %499 = vmatprep.subr.mxu0 0.0
    %500 = vmatpush1.msra.mxu0 0.0
    %501 = vmatprep.subr.mxu0 0.0
    %502 = vmatpush1.msra.mxu0 0.0
    %503 = vmatprep.subr.mxu0 0.0
    %504 = vmatpush1.msra.mxu0 0.0
    %505 = vmatprep.subr.mxu0 0.0
    %506 = vmatpush1.msra.mxu0 0.0
    %507 = vmatprep.subr.mxu0 0.0
    %508 = vmatpush1.msra.mxu0 0.0
    %509 = vmatprep.subr.mxu0 0.0
    %510 = vmatpush1.msra.mxu0 0.0
    %511 = vmatprep.subr.mxu0 0.0
    %512 = vmatpush1.msra.mxu0 0.0
    %513 = vmatprep.subr.mxu0 0.0
    %514 = vmatpush1.msra.mxu0 0.0
    %515 = vmatprep.subr.mxu0 0.0
    %516 = vmatpush1.msra.mxu0 0.0
    %517 = vmatprep.subr.mxu0 0.0
    %518 = vmatpush1.msra.mxu0 0.0
    %519 = vmatprep.subr.mxu0 0.0
    %520 = vmatpush1.msra.mxu0 0.0
    %521 = vmatprep.subr.mxu0 0.0
    %522 = vmatpush1.msra.mxu0 0.0
    %523 = vmatprep.subr.mxu0 0.0
    %524 = vmatpush1.msra.mxu0 0.0
    %525 = vmatprep.subr.mxu0 0.0
    %526 = vmatpush1.msra.mxu0 0.0
    %527 = vmatprep.subr.mxu0 0.0
    %528 = vmatpush1.msra.mxu0 0.0
    %529 = vmatprep.subr.mxu0 0.0
    %530 = vmatpush1.msra.mxu0 0.0
    %531 = vmatprep.subr.mxu0 0.0
    %532 = vmatpush1.msra.mxu0 0.0
    %533 = vmatprep.subr.mxu0 0.0
    %534 = vmatpush1.msra.mxu0 0.0
    %535 = vmatprep.subr.mxu0 0.0
    %536 = vmatpush1.msra.mxu0 0.0
    %537 = vmatprep.subr.mxu0 0.0
    %538 = vmatpush1.msra.mxu0 0.0
    %539 = vmatprep.subr.mxu0 0.0
    %540 = vmatpush1.msra.mxu0 0.0
    %541 = vmatprep.subr.mxu0 0.0
    %542 = vmatpush1.msra.mxu0 0.0
    %543 = vmatprep.subr.mxu0 0.0
    %544 = vmatpush1.msra.mxu0 0.0
    %545 = vmatprep.subr.mxu0 0.0
    %546 = vmatpush1.msra.mxu0 0.0
    %547 = vmatprep.subr.mxu0 0.0
    %548 = vmatpush1.msra.mxu0 0.0
    %549 = vmatprep.subr.mxu0 0.0
    %550 = vmatpush1.msra.mxu0 0.0
    %551 = vmatprep.subr.mxu0 0.0
    %552 = vmatpush1.msra.mxu0 0.0
    %553 = vmatprep.subr.mxu0 0.0
    %554 = vmatpush1.msra.mxu0 0.0
    %555 = vmatprep.mubr.f32.mxu0 0.0
    %556 = vmatmul.mubr.f32.gmra.mrb[0].mxu0 %v489
    %v557 = vpop.f32.mrb[0].mxu0
    %v558 = vadd.f32 0.0, %v557
    %v559 = vpop.f32.mrb[0].mxu0
    %560 = vdwg.mxu0
    %v561 = vadd.f32 %v476, %v558
    %562 = vset.pattern.permute.xlu0 5
    %563 = vperm.xlu0 %562, %v136
    %v564 = vpop.permute.xlu0 %563
    %vm565 = vcmp.eq.s32.totalorder %v564, %v138
    %v566 = vsel %vm565, 1, 0
    %v567 = vcvt.s32.f32 %v566
    %s568 = scalar_lea.vmem [#allocation7], 160
    %v569 = vld [vmem:[%s568] sm:$0xff]
    %v570 = vld [vmem:[%s568 + $0x8] sm:$0xff]
    %v571 = vld [vmem:[%s568 + $0x10] sm:$0xff]
    %v572 = vld [vmem:[%s568 + $0x18] sm:$0xff]
    %v574 = vsel %vm160, %v567, 0
    %576 = vmatprep.subr.mxu0 0.0
    %577 = vmatpush1.msra.mxu0 %v569
    %578 = vmatprep.subr.mxu0 0.0
    %579 = vmatpush1.msra.mxu0 %v570
    %580 = vmatprep.subr.mxu0 0.0
    %581 = vmatpush1.msra.mxu0 %v571
    %582 = vmatprep.subr.mxu0 0.0
    %583 = vmatpush1.msra.mxu0 %v572
    %584 = vmatprep.subr.mxu0 0.0
    %585 = vmatpush1.msra.mxu0 0.0
    %586 = vmatprep.subr.mxu0 0.0
    %587 = vmatpush1.msra.mxu0 0.0
    %588 = vmatprep.subr.mxu0 0.0
    %589 = vmatpush1.msra.mxu0 0.0
    %590 = vmatprep.subr.mxu0 0.0
    %591 = vmatpush1.msra.mxu0 0.0
    %592 = vmatprep.subr.mxu0 0.0
    %593 = vmatpush1.msra.mxu0 0.0
    %594 = vmatprep.subr.mxu0 0.0
    %595 = vmatpush1.msra.mxu0 0.0
    %596 = vmatprep.subr.mxu0 0.0
    %597 = vmatpush1.msra.mxu0 0.0
    %598 = vmatprep.subr.mxu0 0.0
    %599 = vmatpush1.msra.mxu0 0.0
    %600 = vmatprep.subr.mxu0 0.0
    %601 = vmatpush1.msra.mxu0 0.0
    %602 = vmatprep.subr.mxu0 0.0
    %603 = vmatpush1.msra.mxu0 0.0
    %604 = vmatprep.subr.mxu0 0.0
    %605 = vmatpush1.msra.mxu0 0.0
    %606 = vmatprep.subr.mxu0 0.0
    %607 = vmatpush1.msra.mxu0 0.0
    %608 = vmatprep.subr.mxu0 0.0
    %609 = vmatpush1.msra.mxu0 0.0
    %610 = vmatprep.subr.mxu0 0.0
    %611 = vmatpush1.msra.mxu0 0.0
    %612 = vmatprep.subr.mxu0 0.0
    %613 = vmatpush1.msra.mxu0 0.0
    %614 = vmatprep.subr.mxu0 0.0
    %615 = vmatpush1.msra.mxu0 0.0
    %616 = vmatprep.subr.mxu0 0.0
    %617 = vmatpush1.msra.mxu0 0.0
    %618 = vmatprep.subr.mxu0 0.0
    %619 = vmatpush1.msra.mxu0 0.0
    %620 = vmatprep.subr.mxu0 0.0
    %621 = vmatpush1.msra.mxu0 0.0
    %622 = vmatprep.subr.mxu0 0.0
    %623 = vmatpush1.msra.mxu0 0.0
    %624 = vmatprep.subr.mxu0 0.0
    %625 = vmatpush1.msra.mxu0 0.0
    %626 = vmatprep.subr.mxu0 0.0
    %627 = vmatpush1.msra.mxu0 0.0
    %628 = vmatprep.subr.mxu0 0.0
    %629 = vmatpush1.msra.mxu0 0.0
    %630 = vmatprep.subr.mxu0 0.0
    %631 = vmatpush1.msra.mxu0 0.0
    %632 = vmatprep.subr.mxu0 0.0
    %633 = vmatpush1.msra.mxu0 0.0
    %634 = vmatprep.subr.mxu0 0.0
    %635 = vmatpush1.msra.mxu0 0.0
    %636 = vmatprep.subr.mxu0 0.0
    %637 = vmatpush1.msra.mxu0 0.0
    %638 = vmatprep.subr.mxu0 0.0
    %639 = vmatpush1.msra.mxu0 0.0
    %640 = vmatprep.mubr.f32.mxu0 0.0
    %641 = vmatmul.mubr.f32.gmra.mrb[0].mxu0 %v574
    %v642 = vpop.f32.mrb[0].mxu0
    %v643 = vadd.f32 0.0, %v642
    %v644 = vpop.f32.mrb[0].mxu0
    %645 = vdwg.mxu0
    %v646 = vadd.f32 %v561, %v643
    %647 = vset.pattern.permute.xlu0 6
    %648 = vperm.xlu0 %647, %v136
    %v649 = vpop.permute.xlu0 %648
    %vm650 = vcmp.eq.s32.totalorder %v649, %v138
    %v651 = vsel %vm650, 1, 0
    %v652 = vcvt.s32.f32 %v651
    %s653 = scalar_lea.vmem [#allocation7], 192
    %v654 = vld [vmem:[%s653] sm:$0xff]
    %v655 = vld [vmem:[%s653 + $0x8] sm:$0xff]
    %v656 = vld [vmem:[%s653 + $0x10] sm:$0xff]
    %v657 = vld [vmem:[%s653 + $0x18] sm:$0xff]
    %v659 = vsel %vm160, %v652, 0
    %661 = vmatprep.subr.mxu0 0.0
    %662 = vmatpush1.msra.mxu0 %v654
    %663 = vmatprep.subr.mxu0 0.0
    %664 = vmatpush1.msra.mxu0 %v655
    %665 = vmatprep.subr.mxu0 0.0
    %666 = vmatpush1.msra.mxu0 %v656
    %667 = vmatprep.subr.mxu0 0.0
    %668 = vmatpush1.msra.mxu0 %v657
    %669 = vmatprep.subr.mxu0 0.0
    %670 = vmatpush1.msra.mxu0 0.0
    %671 = vmatprep.subr.mxu0 0.0
    %672 = vmatpush1.msra.mxu0 0.0
    %673 = vmatprep.subr.mxu0 0.0
    %674 = vmatpush1.msra.mxu0 0.0
    %675 = vmatprep.subr.mxu0 0.0
    %676 = vmatpush1.msra.mxu0 0.0
    %677 = vmatprep.subr.mxu0 0.0
    %678 = vmatpush1.msra.mxu0 0.0
    %679 = vmatprep.subr.mxu0 0.0
    %680 = vmatpush1.msra.mxu0 0.0
    %681 = vmatprep.subr.mxu0 0.0
    %682 = vmatpush1.msra.mxu0 0.0
    %683 = vmatprep.subr.mxu0 0.0
    %684 = vmatpush1.msra.mxu0 0.0
    %685 = vmatprep.subr.mxu0 0.0
    %686 = vmatpush1.msra.mxu0 0.0
    %687 = vmatprep.subr.mxu0 0.0
    %688 = vmatpush1.msra.mxu0 0.0
    %689 = vmatprep.subr.mxu0 0.0
    %690 = vmatpush1.msra.mxu0 0.0
    %691 = vmatprep.subr.mxu0 0.0
    %692 = vmatpush1.msra.mxu0 0.0
    %693 = vmatprep.subr.mxu0 0.0
    %694 = vmatpush1.msra.mxu0 0.0
    %695 = vmatprep.subr.mxu0 0.0
    %696 = vmatpush1.msra.mxu0 0.0
    %697 = vmatprep.subr.mxu0 0.0
    %698 = vmatpush1.msra.mxu0 0.0
    %699 = vmatprep.subr.mxu0 0.0
    %700 = vmatpush1.msra.mxu0 0.0
    %701 = vmatprep.subr.mxu0 0.0
    %702 = vmatpush1.msra.mxu0 0.0
    %703 = vmatprep.subr.mxu0 0.0
    %704 = vmatpush1.msra.mxu0 0.0
    %705 = vmatprep.subr.mxu0 0.0
    %706 = vmatpush1.msra.mxu0 0.0
    %707 = vmatprep.subr.mxu0 0.0
    %708 = vmatpush1.msra.mxu0 0.0
    %709 = vmatprep.subr.mxu0 0.0
    %710 = vmatpush1.msra.mxu0 0.0
    %711 = vmatprep.subr.mxu0 0.0
    %712 = vmatpush1.msra.mxu0 0.0
    %713 = vmatprep.subr.mxu0 0.0
    %714 = vmatpush1.msra.mxu0 0.0
    %715 = vmatprep.subr.mxu0 0.0
    %716 = vmatpush1.msra.mxu0 0.0
    %717 = vmatprep.subr.mxu0 0.0
    %718 = vmatpush1.msra.mxu0 0.0
    %719 = vmatprep.subr.mxu0 0.0
    %720 = vmatpush1.msra.mxu0 0.0
    %721 = vmatprep.subr.mxu0 0.0
    %722 = vmatpush1.msra.mxu0 0.0
    %723 = vmatprep.subr.mxu0 0.0
    %724 = vmatpush1.msra.mxu0 0.0
    %725 = vmatprep.mubr.f32.mxu0 0.0
    %726 = vmatmul.mubr.f32.gmra.mrb[0].mxu0 %v659
    %v727 = vpop.f32.mrb[0].mxu0
    %v728 = vadd.f32 0.0, %v727
    %v729 = vpop.f32.mrb[0].mxu0
    %730 = vdwg.mxu0
    %v731 = vadd.f32 %v646, %v728
    %732 = vset.pattern.permute.xlu0 7
    %733 = vperm.xlu0 %732, %v136
    %v734 = vpop.permute.xlu0 %733
    %vm735 = vcmp.eq.s32.totalorder %v734, %v138
    %v736 = vsel %vm735, 1, 0
    %v737 = vcvt.s32.f32 %v736
    %s738 = scalar_lea.vmem [#allocation7], 224
    %v739 = vld [vmem:[%s738] sm:$0xff]
    %v740 = vld [vmem:[%s738 + $0x8] sm:$0xff]
    %v741 = vld [vmem:[%s738 + $0x10] sm:$0xff]
    %v742 = vld [vmem:[%s738 + $0x18] sm:$0xff]
    %v744 = vsel %vm160, %v737, 0
    %746 = vmatprep.subr.mxu0 0.0
    %747 = vmatpush1.msra.mxu0 %v739
    %748 = vmatprep.subr.mxu0 0.0
    %749 = vmatpush1.msra.mxu0 %v740
    %750 = vmatprep.subr.mxu0 0.0
    %751 = vmatpush1.msra.mxu0 %v741
    %752 = vmatprep.subr.mxu0 0.0
    %753 = vmatpush1.msra.mxu0 %v742
    %754 = vmatprep.subr.mxu0 0.0
    %755 = vmatpush1.msra.mxu0 0.0
    %756 = vmatprep.subr.mxu0 0.0
    %757 = vmatpush1.msra.mxu0 0.0
    %758 = vmatprep.subr.mxu0 0.0
    %759 = vmatpush1.msra.mxu0 0.0
    %760 = vmatprep.subr.mxu0 0.0
    %761 = vmatpush1.msra.mxu0 0.0
    %762 = vmatprep.subr.mxu0 0.0
    %763 = vmatpush1.msra.mxu0 0.0
    %764 = vmatprep.subr.mxu0 0.0
    %765 = vmatpush1.msra.mxu0 0.0
    %766 = vmatprep.subr.mxu0 0.0
    %767 = vmatpush1.msra.mxu0 0.0
    %768 = vmatprep.subr.mxu0 0.0
    %769 = vmatpush1.msra.mxu0 0.0
    %770 = vmatprep.subr.mxu0 0.0
    %771 = vmatpush1.msra.mxu0 0.0
    %772 = vmatprep.subr.mxu0 0.0
    %773 = vmatpush1.msra.mxu0 0.0
    %774 = vmatprep.subr.mxu0 0.0
    %775 = vmatpush1.msra.mxu0 0.0
    %776 = vmatprep.subr.mxu0 0.0
    %777 = vmatpush1.msra.mxu0 0.0
    %778 = vmatprep.subr.mxu0 0.0
    %779 = vmatpush1.msra.mxu0 0.0
    %780 = vmatprep.subr.mxu0 0.0
    %781 = vmatpush1.msra.mxu0 0.0
    %782 = vmatprep.subr.mxu0 0.0
    %783 = vmatpush1.msra.mxu0 0.0
    %784 = vmatprep.subr.mxu0 0.0
    %785 = vmatpush1.msra.mxu0 0.0
    %786 = vmatprep.subr.mxu0 0.0
    %787 = vmatpush1.msra.mxu0 0.0
    %788 = vmatprep.subr.mxu0 0.0
    %789 = vmatpush1.msra.mxu0 0.0
    %790 = vmatprep.subr.mxu0 0.0
    %791 = vmatpush1.msra.mxu0 0.0
    %792 = vmatprep.subr.mxu0 0.0
    %793 = vmatpush1.msra.mxu0 0.0
    %794 = vmatprep.subr.mxu0 0.0
    %795 = vmatpush1.msra.mxu0 0.0
    %796 = vmatprep.subr.mxu0 0.0
    %797 = vmatpush1.msra.mxu0 0.0
    %798 = vmatprep.subr.mxu0 0.0
    %799 = vmatpush1.msra.mxu0 0.0
    %800 = vmatprep.subr.mxu0 0.0
    %801 = vmatpush1.msra.mxu0 0.0
    %802 = vmatprep.subr.mxu0 0.0
    %803 = vmatpush1.msra.mxu0 0.0
    %804 = vmatprep.subr.mxu0 0.0
    %805 = vmatpush1.msra.mxu0 0.0
    %806 = vmatprep.subr.mxu0 0.0
    %807 = vmatpush1.msra.mxu0 0.0
    %808 = vmatprep.subr.mxu0 0.0
    %809 = vmatpush1.msra.mxu0 0.0
    %810 = vmatprep.mubr.f32.mxu0 0.0
    %811 = vmatmul.mubr.f32.gmra.mrb[0].mxu0 %v744
    %v812 = vpop.f32.mrb[0].mxu0
    %v813 = vadd.f32 0.0, %v812
    %v814 = vpop.f32.mrb[0].mxu0
    %815 = vdwg.mxu0
    %v816 = vadd.f32 %v731, %v813
    %v817 = vld [vmem:[%s3] sm:$0x1]
    %v819 = vlaneseq
    %v820 = vshrl.u32 %v819, 7
    %v821 = vsub.s32 0, %v820
    %v822 = vrot.slane %v817, %v821
    %v824 = vadd.f32 %v816, %v822
    %v825 = vmax.f32 %v824, 0.0
    %v826 = vld [vmem:[#allocation8] sm:$0xff]
    %v827 = vld [vmem:[#allocation8 + $0x8] sm:$0xff]
    %v828 = vld [vmem:[#allocation8 + $0x10] sm:$0xff]
    %v829 = vld [vmem:[#allocation8 + $0x18] sm:$0xff]
    %v830 = vld [vmem:[#allocation8 + $0x20] sm:$0xff]
    %v831 = vld [vmem:[#allocation8 + $0x28] sm:$0xff]
    %v832 = vld [vmem:[#allocation8 + $0x30] sm:$0xff]
    %v833 = vld [vmem:[#allocation8 + $0x38] sm:$0xff]
    %v834 = vld [vmem:[#allocation8 + $0x40] sm:$0xff]
    %v835 = vld [vmem:[#allocation8 + $0x48] sm:$0xff]
    %v836 = vld [vmem:[#allocation8 + $0x50] sm:$0xff]
    %v837 = vld [vmem:[#allocation8 + $0x58] sm:$0xff]
    %v838 = vld [vmem:[#allocation8 + $0x60] sm:$0xff]
    %v839 = vld [vmem:[#allocation8 + $0x68] sm:$0xff]
    %v840 = vld [vmem:[#allocation8 + $0x70] sm:$0xff]
    %v841 = vld [vmem:[#allocation8 + $0x78] sm:$0xff]
    %v842 = vld [vmem:[%s5] sm:$0x1]
    %v844 = vlaneseq
    %v845 = vshrl.u32 %v844, 7
    %v846 = vsub.s32 0, %v845
    %v847 = vrot.slane %v842, %v846
    %849 = vmatprep.subr.mxu0 0.0
    %850 = vmatpush1.msra.mxu0 %v826
    %851 = vmatprep.subr.mxu0 0.0
    %852 = vmatpush1.msra.mxu0 %v827
    %853 = vmatprep.subr.mxu0 0.0
    %854 = vmatpush1.msra.mxu0 %v828
    %855 = vmatprep.subr.mxu0 0.0
    %856 = vmatpush1.msra.mxu0 %v829
    %857 = vmatprep.subr.mxu0 0.0
    %858 = vmatpush1.msra.mxu0 %v830
    %859 = vmatprep.subr.mxu0 0.0
    %860 = vmatpush1.msra.mxu0 %v831
    %861 = vmatprep.subr.mxu0 0.0
    %862 = vmatpush1.msra.mxu0 %v832
    %863 = vmatprep.subr.mxu0 0.0
    %864 = vmatpush1.msra.mxu0 %v833
    %865 = vmatprep.subr.mxu0 0.0
    %866 = vmatpush1.msra.mxu0 %v834
    %867 = vmatprep.subr.mxu0 0.0
    %868 = vmatpush1.msra.mxu0 %v835
    %869 = vmatprep.subr.mxu0 0.0
    %870 = vmatpush1.msra.mxu0 %v836
    %871 = vmatprep.subr.mxu0 0.0
    %872 = vmatpush1.msra.mxu0 %v837
    %873 = vmatprep.subr.mxu0 0.0
    %874 = vmatpush1.msra.mxu0 %v838
    %875 = vmatprep.subr.mxu0 0.0
    %876 = vmatpush1.msra.mxu0 %v839
    %877 = vmatprep.subr.mxu0 0.0
    %878 = vmatpush1.msra.mxu0 %v840
    %879 = vmatprep.subr.mxu0 0.0
    %880 = vmatpush1.msra.mxu0 %v841
    %881 = vmatprep.subr.mxu0 0.0
    %882 = vmatpush1.msra.mxu0 0.0
    %883 = vmatprep.subr.mxu0 0.0
    %884 = vmatpush1.msra.mxu0 0.0
    %885 = vmatprep.subr.mxu0 0.0
    %886 = vmatpush1.msra.mxu0 0.0
    %887 = vmatprep.subr.mxu0 0.0
    %888 = vmatpush1.msra.mxu0 0.0
    %889 = vmatprep.subr.mxu0 0.0
    %890 = vmatpush1.msra.mxu0 0.0
    %891 = vmatprep.subr.mxu0 0.0
    %892 = vmatpush1.msra.mxu0 0.0
    %893 = vmatprep.subr.mxu0 0.0
    %894 = vmatpush1.msra.mxu0 0.0
    %895 = vmatprep.subr.mxu0 0.0
    %896 = vmatpush1.msra.mxu0 0.0
    %897 = vmatprep.subr.mxu0 0.0
    %898 = vmatpush1.msra.mxu0 0.0
    %899 = vmatprep.subr.mxu0 0.0
    %900 = vmatpush1.msra.mxu0 0.0
    %901 = vmatprep.subr.mxu0 0.0
    %902 = vmatpush1.msra.mxu0 0.0
    %903 = vmatprep.subr.mxu0 0.0
    %904 = vmatpush1.msra.mxu0 0.0
    %905 = vmatprep.subr.mxu0 0.0
    %906 = vmatpush1.msra.mxu0 0.0
    %907 = vmatprep.subr.mxu0 0.0
    %908 = vmatpush1.msra.mxu0 0.0
    %909 = vmatprep.subr.mxu0 0.0
    %910 = vmatpush1.msra.mxu0 0.0
    %911 = vmatprep.subr.mxu0 0.0
    %912 = vmatpush1.msra.mxu0 0.0
    %913 = vmatprep.mubr.f32.mxu0 0.0
    %914 = vmatmul.mubr.f32.gmra.mrb[0].mxu0 %v825
    %v915 = vpop.f32.mrb[0].mxu0
    %v916 = vadd.f32 %v847, %v915
    %v917 = vpop.f32.mrb[0].mxu0
    %918 = vdwg.mxu0
    %v919 = vmax.f32 %v916, 0.0
    %v920 = vld [vmem:[#allocation5] sm:$0xff]
    %v921 = vld [vmem:[%s6] sm:$0x3f]
    %v922 = vld [vmem:[%s7] sm:$0x1]
    %v924 = vlaneseq
    %v925 = vshrl.u32 %v924, 7
    %v926 = vsub.s32 0, %v925
    %v927 = vrot.slane %v922, %v926
    %vm929 = vcmask 48128
    %v931 = vsel %vm929, %v920, 0
    %vm933 = vcmask 1045504
    %v935 = vsel %vm933, %v921, 0
    %937 = vmatprep.subr.mxu0 0.0
    %938 = vmatpush1.msra.mxu0 %v935
    %939 = vmatprep.subr.mxu0 0.0
    %940 = vmatpush1.msra.mxu0 0.0
    %941 = vmatprep.subr.mxu0 0.0
    %942 = vmatpush1.msra.mxu0 0.0
    %943 = vmatprep.subr.mxu0 0.0
    %944 = vmatpush1.msra.mxu0 0.0
    %945 = vmatprep.subr.mxu0 0.0
    %946 = vmatpush1.msra.mxu0 0.0
    %947 = vmatprep.subr.mxu0 0.0
    %948 = vmatpush1.msra.mxu0 0.0
    %949 = vmatprep.subr.mxu0 0.0
    %950 = vmatpush1.msra.mxu0 0.0
    %951 = vmatprep.subr.mxu0 0.0
    %952 = vmatpush1.msra.mxu0 0.0
    %953 = vmatprep.subr.mxu0 0.0
    %954 = vmatpush1.msra.mxu0 0.0
    %955 = vmatprep.subr.mxu0 0.0
    %956 = vmatpush1.msra.mxu0 0.0
    %957 = vmatprep.subr.mxu0 0.0
    %958 = vmatpush1.msra.mxu0 0.0
    %959 = vmatprep.subr.mxu0 0.0
    %960 = vmatpush1.msra.mxu0 0.0
    %961 = vmatprep.subr.mxu0 0.0
    %962 = vmatpush1.msra.mxu0 0.0
    %963 = vmatprep.subr.mxu0 0.0
    %964 = vmatpush1.msra.mxu0 0.0
    %965 = vmatprep.subr.mxu0 0.0
    %966 = vmatpush1.msra.mxu0 0.0
    %967 = vmatprep.subr.mxu0 0.0
    %968 = vmatpush1.msra.mxu0 0.0
    %969 = vmatprep.subr.mxu0 0.0
    %970 = vmatpush1.msra.mxu0 0.0
    %971 = vmatprep.subr.mxu0 0.0
    %972 = vmatpush1.msra.mxu0 0.0
    %973 = vmatprep.subr.mxu0 0.0
    %974 = vmatpush1.msra.mxu0 0.0
    %975 = vmatprep.subr.mxu0 0.0
    %976 = vmatpush1.msra.mxu0 0.0
    %977 = vmatprep.subr.mxu0 0.0
    %978 = vmatpush1.msra.mxu0 0.0
    %979 = vmatprep.subr.mxu0 0.0
    %980 = vmatpush1.msra.mxu0 0.0
    %981 = vmatprep.subr.mxu0 0.0
    %982 = vmatpush1.msra.mxu0 0.0
    %983 = vmatprep.subr.mxu0 0.0
    %984 = vmatpush1.msra.mxu0 0.0
    %985 = vmatprep.subr.mxu0 0.0
    %986 = vmatpush1.msra.mxu0 0.0
    %987 = vmatprep.subr.mxu0 0.0
    %988 = vmatpush1.msra.mxu0 0.0
    %989 = vmatprep.subr.mxu0 0.0
    %990 = vmatpush1.msra.mxu0 0.0
    %991 = vmatprep.subr.mxu0 0.0
    %992 = vmatpush1.msra.mxu0 0.0
    %993 = vmatprep.subr.mxu0 0.0
    %994 = vmatpush1.msra.mxu0 0.0
    %995 = vmatprep.subr.mxu0 0.0
    %996 = vmatpush1.msra.mxu0 0.0
    %997 = vmatprep.subr.mxu0 0.0
    %998 = vmatpush1.msra.mxu0 0.0
    %999 = vmatprep.subr.mxu0 0.0
    %1000 = vmatpush1.msra.mxu0 0.0
    %1001 = vmatprep.mubr.f32.mxu0 0.0
    %1002 = vmatmul.mubr.f32.gmra.mrb[0].mxu0 %v931
    %v1003 = vpop.f32.mrb[0].mxu0
    %v1004 = vadd.f32 %v927, %v1003
    %v1005 = vpop.f32.mrb[0].mxu0
    %1006 = vdwg.mxu0
    %v1007 = vmax.f32 %v1004, 0.0
    %v1008 = vld [vmem:[#allocation10] sm:$0xff]
    %v1009 = vld [vmem:[#allocation10 + $0x8] sm:$0xff]
    %v1010 = vld [vmem:[#allocation10 + $0x10] sm:$0xff]
    %v1011 = vld [vmem:[#allocation10 + $0x18] sm:$0xff]
    %v1012 = vld [vmem:[#allocation10 + $0x20] sm:$0xff]
    %v1013 = vld [vmem:[#allocation10 + $0x28] sm:$0xff]
    %v1014 = vld [vmem:[#allocation10 + $0x30] sm:$0xff]
    %v1015 = vld [vmem:[#allocation10 + $0x38] sm:$0xff]
    %v1016 = vld [vmem:[#allocation10 + $0x40] sm:$0xff]
    %v1017 = vld [vmem:[#allocation10 + $0x48] sm:$0xff]
    %v1018 = vld [vmem:[#allocation10 + $0x50] sm:$0xff]
    %v1019 = vld [vmem:[#allocation10 + $0x58] sm:$0xff]
    %v1020 = vld [vmem:[#allocation10 + $0x60] sm:$0xff]
    %v1021 = vld [vmem:[#allocation10 + $0x68] sm:$0xff]
    %v1022 = vld [vmem:[#allocation10 + $0x70] sm:$0xff]
    %v1023 = vld [vmem:[#allocation10 + $0x78] sm:$0xff]
    %v1024 = vld [vmem:[%s9] sm:$0x1]
    %v1026 = vlaneseq
    %v1027 = vshrl.u32 %v1026, 7
    %v1028 = vsub.s32 0, %v1027
    %v1029 = vrot.slane %v1024, %v1028
    %1031 = vmatprep.subr.mxu0 0.0
    %1032 = vmatpush1.msra.mxu0 %v1008
    %1033 = vmatprep.subr.mxu0 0.0
    %1034 = vmatpush1.msra.mxu0 %v1009
    %1035 = vmatprep.subr.mxu0 0.0
    %1036 = vmatpush1.msra.mxu0 %v1010
    %1037 = vmatprep.subr.mxu0 0.0
    %1038 = vmatpush1.msra.mxu0 %v1011
    %1039 = vmatprep.subr.mxu0 0.0
    %1040 = vmatpush1.msra.mxu0 %v1012
    %1041 = vmatprep.subr.mxu0 0.0
    %1042 = vmatpush1.msra.mxu0 %v1013
    %1043 = vmatprep.subr.mxu0 0.0
    %1044 = vmatpush1.msra.mxu0 %v1014
    %1045 = vmatprep.subr.mxu0 0.0
    %1046 = vmatpush1.msra.mxu0 %v1015
    %1047 = vmatprep.subr.mxu0 0.0
    %1048 = vmatpush1.msra.mxu0 %v1016
    %1049 = vmatprep.subr.mxu0 0.0
    %1050 = vmatpush1.msra.mxu0 %v1017
    %1051 = vmatprep.subr.mxu0 0.0
    %1052 = vmatpush1.msra.mxu0 %v1018
    %1053 = vmatprep.subr.mxu0 0.0
    %1054 = vmatpush1.msra.mxu0 %v1019
    %1055 = vmatprep.subr.mxu0 0.0
    %1056 = vmatpush1.msra.mxu0 %v1020
    %1057 = vmatprep.subr.mxu0 0.0
    %1058 = vmatpush1.msra.mxu0 %v1021
    %1059 = vmatprep.subr.mxu0 0.0
    %1060 = vmatpush1.msra.mxu0 %v1022
    %1061 = vmatprep.subr.mxu0 0.0
    %1062 = vmatpush1.msra.mxu0 %v1023
    %1063 = vmatprep.subr.mxu0 0.0
    %1064 = vmatpush1.msra.mxu0 0.0
    %1065 = vmatprep.subr.mxu0 0.0
    %1066 = vmatpush1.msra.mxu0 0.0
    %1067 = vmatprep.subr.mxu0 0.0
    %1068 = vmatpush1.msra.mxu0 0.0
    %1069 = vmatprep.subr.mxu0 0.0
    %1070 = vmatpush1.msra.mxu0 0.0
    %1071 = vmatprep.subr.mxu0 0.0
    %1072 = vmatpush1.msra.mxu0 0.0
    %1073 = vmatprep.subr.mxu0 0.0
    %1074 = vmatpush1.msra.mxu0 0.0
    %1075 = vmatprep.subr.mxu0 0.0
    %1076 = vmatpush1.msra.mxu0 0.0
    %1077 = vmatprep.subr.mxu0 0.0
    %1078 = vmatpush1.msra.mxu0 0.0
    %1079 = vmatprep.subr.mxu0 0.0
    %1080 = vmatpush1.msra.mxu0 0.0
    %1081 = vmatprep.subr.mxu0 0.0
    %1082 = vmatpush1.msra.mxu0 0.0
    %1083 = vmatprep.subr.mxu0 0.0
    %1084 = vmatpush1.msra.mxu0 0.0
    %1085 = vmatprep.subr.mxu0 0.0
    %1086 = vmatpush1.msra.mxu0 0.0
    %1087 = vmatprep.subr.mxu0 0.0
    %1088 = vmatpush1.msra.mxu0 0.0
    %1089 = vmatprep.subr.mxu0 0.0
    %1090 = vmatpush1.msra.mxu0 0.0
    %1091 = vmatprep.subr.mxu0 0.0
    %1092 = vmatpush1.msra.mxu0 0.0
    %1093 = vmatprep.subr.mxu0 0.0
    %1094 = vmatpush1.msra.mxu0 0.0
    %1095 = vmatprep.mubr.f32.mxu0 0.0
    %1096 = vmatmul.mubr.f32.gmra.mrb[0].mxu0 %v1007
    %v1097 = vpop.f32.mrb[0].mxu0
    %v1098 = vadd.f32 %v1029, %v1097
    %v1099 = vpop.f32.mrb[0].mxu0
    %1100 = vdwg.mxu0
    %v1101 = vmax.f32 %v1098, 0.0
    %v1102 = vld [vmem:[#allocation11] sm:$0xff]
    %v1103 = vld [vmem:[#allocation11 + $0x8] sm:$0xff]
    %v1104 = vld [vmem:[#allocation11 + $0x10] sm:$0xff]
    %v1105 = vld [vmem:[#allocation11 + $0x18] sm:$0xff]
    %v1106 = vld [vmem:[#allocation11 + $0x20] sm:$0xff]
    %v1107 = vld [vmem:[#allocation11 + $0x28] sm:$0xff]
    %v1108 = vld [vmem:[#allocation11 + $0x30] sm:$0xff]
    %v1109 = vld [vmem:[#allocation11 + $0x38] sm:$0xff]
    %v1110 = vld [vmem:[#allocation11 + $0x40] sm:$0xff]
    %v1111 = vld [vmem:[#allocation11 + $0x48] sm:$0xff]
    %v1112 = vld [vmem:[#allocation11 + $0x50] sm:$0xff]
    %v1113 = vld [vmem:[#allocation11 + $0x58] sm:$0xff]
    %v1114 = vld [vmem:[#allocation11 + $0x60] sm:$0xff]
    %v1115 = vld [vmem:[#allocation11 + $0x68] sm:$0xff]
    %v1116 = vld [vmem:[#allocation11 + $0x70] sm:$0xff]
    %v1117 = vld [vmem:[#allocation11 + $0x78] sm:$0xff]
    %v1118 = vld [vmem:[#allocation13] sm:$0xff]
    %v1119 = vld [vmem:[#allocation13 + $0x8] sm:$0xff]
    %v1120 = vld [vmem:[#allocation13 + $0x10] sm:$0xff]
    %v1121 = vld [vmem:[#allocation13 + $0x18] sm:$0xff]
    %v1122 = vld [vmem:[#allocation13 + $0x20] sm:$0xff]
    %v1123 = vld [vmem:[#allocation13 + $0x28] sm:$0xff]
    %v1124 = vld [vmem:[#allocation13 + $0x30] sm:$0xff]
    %v1125 = vld [vmem:[#allocation13 + $0x38] sm:$0xff]
    %v1126 = vld [vmem:[#allocation13 + $0x40] sm:$0xff]
    %v1127 = vld [vmem:[#allocation13 + $0x48] sm:$0xff]
    %v1128 = vld [vmem:[#allocation13 + $0x50] sm:$0xff]
    %v1129 = vld [vmem:[#allocation13 + $0x58] sm:$0xff]
    %v1130 = vld [vmem:[#allocation13 + $0x60] sm:$0xff]
    %v1131 = vld [vmem:[#allocation13 + $0x68] sm:$0xff]
    %v1132 = vld [vmem:[#allocation13 + $0x70] sm:$0xff]
    %v1133 = vld [vmem:[#allocation13 + $0x78] sm:$0xff]
    %1134 = vmatprep.subr.mxu0 0.0
    %1135 = vmatpush1.msra.mxu0 %v1118
    %1136 = vmatprep.subr.mxu0 0.0
    %1137 = vmatpush1.msra.mxu0 %v1119
    %1138 = vmatprep.subr.mxu0 0.0
    %1139 = vmatpush1.msra.mxu0 %v1120
    %1140 = vmatprep.subr.mxu0 0.0
    %1141 = vmatpush1.msra.mxu0 %v1121
    %1142 = vmatprep.subr.mxu0 0.0
    %1143 = vmatpush1.msra.mxu0 %v1122
    %1144 = vmatprep.subr.mxu0 0.0
    %1145 = vmatpush1.msra.mxu0 %v1123
    %1146 = vmatprep.subr.mxu0 0.0
    %1147 = vmatpush1.msra.mxu0 %v1124
    %1148 = vmatprep.subr.mxu0 0.0
    %1149 = vmatpush1.msra.mxu0 %v1125
    %1150 = vmatprep.subr.mxu0 0.0
    %1151 = vmatpush1.msra.mxu0 %v1126
    %1152 = vmatprep.subr.mxu0 0.0
    %1153 = vmatpush1.msra.mxu0 %v1127
    %1154 = vmatprep.subr.mxu0 0.0
    %1155 = vmatpush1.msra.mxu0 %v1128
    %1156 = vmatprep.subr.mxu0 0.0
    %1157 = vmatpush1.msra.mxu0 %v1129
    %1158 = vmatprep.subr.mxu0 0.0
    %1159 = vmatpush1.msra.mxu0 %v1130
    %1160 = vmatprep.subr.mxu0 0.0
    %1161 = vmatpush1.msra.mxu0 %v1131
    %1162 = vmatprep.subr.mxu0 0.0
    %1163 = vmatpush1.msra.mxu0 %v1132
    %1164 = vmatprep.subr.mxu0 0.0
    %1165 = vmatpush1.msra.mxu0 %v1133
    %1166 = vmatprep.subr.mxu0 0.0
    %1167 = vmatpush1.msra.mxu0 0.0
    %1168 = vmatprep.subr.mxu0 0.0
    %1169 = vmatpush1.msra.mxu0 0.0
    %1170 = vmatprep.subr.mxu0 0.0
    %1171 = vmatpush1.msra.mxu0 0.0
    %1172 = vmatprep.subr.mxu0 0.0
    %1173 = vmatpush1.msra.mxu0 0.0
    %1174 = vmatprep.subr.mxu0 0.0
    %1175 = vmatpush1.msra.mxu0 0.0
    %1176 = vmatprep.subr.mxu0 0.0
    %1177 = vmatpush1.msra.mxu0 0.0
    %1178 = vmatprep.subr.mxu0 0.0
    %1179 = vmatpush1.msra.mxu0 0.0
    %1180 = vmatprep.subr.mxu0 0.0
    %1181 = vmatpush1.msra.mxu0 0.0
    %1182 = vmatprep.subr.mxu0 0.0
    %1183 = vmatpush1.msra.mxu0 0.0
    %1184 = vmatprep.subr.mxu0 0.0
    %1185 = vmatpush1.msra.mxu0 0.0
    %1186 = vmatprep.subr.mxu0 0.0
    %1187 = vmatpush1.msra.mxu0 0.0
    %1188 = vmatprep.subr.mxu0 0.0
    %1189 = vmatpush1.msra.mxu0 0.0
    %1190 = vmatprep.subr.mxu0 0.0
    %1191 = vmatpush1.msra.mxu0 0.0
    %1192 = vmatprep.subr.mxu0 0.0
    %1193 = vmatpush1.msra.mxu0 0.0
    %1194 = vmatprep.subr.mxu0 0.0
    %1195 = vmatpush1.msra.mxu0 0.0
    %1196 = vmatprep.subr.mxu0 0.0
    %1197 = vmatpush1.msra.mxu0 0.0
    %1198 = vmatprep.mubr.f32.mxu0 0.0
    %1199 = vmatmul.mubr.f32.gmra.mrb[0].mxu0 %v1101
    %v1200 = vpop.f32.mrb[0].mxu0
    %v1201 = vadd.f32 0.0, %v1200
    %v1202 = vpop.f32.mrb[0].mxu0
    %1203 = vdwg.mxu0
    %1204 = vmatprep.subr.mxu0 0.0
    %1205 = vmatpush1.msra.mxu0 %v1102
    %1206 = vmatprep.subr.mxu0 0.0
    %1207 = vmatpush1.msra.mxu0 %v1103
    %1208 = vmatprep.subr.mxu0 0.0
    %1209 = vmatpush1.msra.mxu0 %v1104
    %1210 = vmatprep.subr.mxu0 0.0
    %1211 = vmatpush1.msra.mxu0 %v1105
    %1212 = vmatprep.subr.mxu0 0.0
    %1213 = vmatpush1.msra.mxu0 %v1106
    %1214 = vmatprep.subr.mxu0 0.0
    %1215 = vmatpush1.msra.mxu0 %v1107
    %1216 = vmatprep.subr.mxu0 0.0
    %1217 = vmatpush1.msra.mxu0 %v1108
    %1218 = vmatprep.subr.mxu0 0.0
    %1219 = vmatpush1.msra.mxu0 %v1109
    %1220 = vmatprep.subr.mxu0 0.0
    %1221 = vmatpush1.msra.mxu0 %v1110
    %1222 = vmatprep.subr.mxu0 0.0
    %1223 = vmatpush1.msra.mxu0 %v1111
    %1224 = vmatprep.subr.mxu0 0.0
    %1225 = vmatpush1.msra.mxu0 %v1112
    %1226 = vmatprep.subr.mxu0 0.0
    %1227 = vmatpush1.msra.mxu0 %v1113
    %1228 = vmatprep.subr.mxu0 0.0
    %1229 = vmatpush1.msra.mxu0 %v1114
    %1230 = vmatprep.subr.mxu0 0.0
    %1231 = vmatpush1.msra.mxu0 %v1115
    %1232 = vmatprep.subr.mxu0 0.0
    %1233 = vmatpush1.msra.mxu0 %v1116
    %1234 = vmatprep.subr.mxu0 0.0
    %1235 = vmatpush1.msra.mxu0 %v1117
    %1236 = vmatprep.subr.mxu0 0.0
    %1237 = vmatpush1.msra.mxu0 0.0
    %1238 = vmatprep.subr.mxu0 0.0
    %1239 = vmatpush1.msra.mxu0 0.0
    %1240 = vmatprep.subr.mxu0 0.0
    %1241 = vmatpush1.msra.mxu0 0.0
    %1242 = vmatprep.subr.mxu0 0.0
    %1243 = vmatpush1.msra.mxu0 0.0
    %1244 = vmatprep.subr.mxu0 0.0
    %1245 = vmatpush1.msra.mxu0 0.0
    %1246 = vmatprep.subr.mxu0 0.0
    %1247 = vmatpush1.msra.mxu0 0.0
    %1248 = vmatprep.subr.mxu0 0.0
    %1249 = vmatpush1.msra.mxu0 0.0
    %1250 = vmatprep.subr.mxu0 0.0
    %1251 = vmatpush1.msra.mxu0 0.0
    %1252 = vmatprep.subr.mxu0 0.0
    %1253 = vmatpush1.msra.mxu0 0.0
    %1254 = vmatprep.subr.mxu0 0.0
    %1255 = vmatpush1.msra.mxu0 0.0
    %1256 = vmatprep.subr.mxu0 0.0
    %1257 = vmatpush1.msra.mxu0 0.0
    %1258 = vmatprep.subr.mxu0 0.0
    %1259 = vmatpush1.msra.mxu0 0.0
    %1260 = vmatprep.subr.mxu0 0.0
    %1261 = vmatpush1.msra.mxu0 0.0
    %1262 = vmatprep.subr.mxu0 0.0
    %1263 = vmatpush1.msra.mxu0 0.0
    %1264 = vmatprep.subr.mxu0 0.0
    %1265 = vmatpush1.msra.mxu0 0.0
    %1266 = vmatprep.subr.mxu0 0.0
    %1267 = vmatpush1.msra.mxu0 0.0
    %1268 = vmatprep.mubr.f32.mxu0 0.0
    %1269 = vmatmul.mubr.f32.gmra.mrb[0].mxu0 %v919
    %v1270 = vpop.f32.mrb[0].mxu0
    %v1271 = vadd.f32 %v1201, %v1270
    %v1272 = vpop.f32.mrb[0].mxu0
    %1273 = vdwg.mxu0
    %v1274 = vld [vmem:[%s12] sm:$0x1]
    %v1276 = vlaneseq
    %v1277 = vshrl.u32 %v1276, 7
    %v1278 = vsub.s32 0, %v1277
    %v1279 = vrot.slane %v1274, %v1278
    %v1281 = vadd.f32 %v1271, %v1279
    %1282 = vst [vmem:[#allocation14] sm:$0xff] %v1281
    // Predicated region
    $region82: #{tpu_custom_call.1} parent=1 // pred_check
      _
    $region83: #{tpu_custom_call.1} parent=1 // pred_check_branch
      %1284 = sbr.rel (0) target = $region85
    $region84: #{tpu_custom_call.1} parent=1 // pred_region
      %s1286 = ssub.s32 128, 128
      %1287 = vsyncadd [#allocation4], %s1286
      %s1289 = sshll.u32 [#allocation14], 4
      %s1290 = int_to_ptr.vmem [resolvable:$true] %s1289
      %1292 = dma.vmem_to_hbm [thread:$0]  %s1290, 128, %s13, [#allocation4]
    $region85: #{tpu_custom_call.1} parent=1 // pred_fallthru
      _
    // Predicated region
    $region86: #{tpu_custom_call.1} parent=1 // pred_check
      _
    $region87: #{tpu_custom_call.1} parent=1 // pred_check_branch
      %1294 = sbr.rel (0) target = $region89
    $region88: #{tpu_custom_call.1} parent=1 // pred_region
      %1295 = dma.done [#allocation4], 128
    $region89: #{tpu_custom_call.1} parent=1 // pred_fallthru
      _
    %1296 = vsyncpa [#allocation3], 1
    %1297 = vsyncpa [#allocation6], 1
    %1298 = vsyncpa [#allocation9], 1
    %1299 = vsyncpa [#allocation12], 1
    %1300 = vsyncpa [#allocation4], 1

</llo_original>
